<compile_context>
chip_gen: v7x
topology: tpu7x:2x2x1
jax: 0.10.0
libtpu: 0.0.40
codegen_flags: <defaults>
</compile_context>

<pallas_src>
import math

import jax
import jax.numpy as jnp
import numpy as np
from jax import lax
from jax.experimental import pallas as pl
from jax.experimental.pallas import tpu as pltpu


def _round_up(x, m):
    return ((x + m - 1) // m) * m


def _pick_q_tile(S):
    # Prefer 256-wide q tiles (v6e/v7x MXU is 2x256x256), then 128 (v5e),
    # otherwise a single full-sequence tile for short / odd lengths.
    for t in (256, 128):
        if S % t == 0 and S >= t:
            return t
    return S


def multi_head_attention(query, key, value, params, mask=None, *,
                         return_attn=True,
                         compute_dtype=jnp.float32,
                         attn_dtype=jnp.float32):
    """Fused multi-head attention forward pass.

    query/key/value: (B, S, dim_in) float32.
    params (PyTorch layouts): wq (H, dim_q, dim_in), bq (H, dim_q),
        wk/wv (H, dim_k, dim_in), bk/bv (H, dim_k),
        w_lin (dim_in, H*dim_k), b_lin (dim_in,).
    mask: None, (S, S), (1, S, S) or (B, S, S) additive-style mask (PyTorch
        semantics: scores += mask * -1e9 before softmax).
    compute_dtype: dtype of MXU operands (f32 accumulation always). bfloat16 is
        recommended on v5e/v6e/v7x for ~2x matmul throughput.
    attn_dtype: storage dtype of the returned probabilities. Default f32 keeps
        the PyTorch-facing contract; bfloat16 halves the HBM writeback.

    Returns (output (B, S, dim_in) f32, attns) where attns is a stacked
    (B, H, S, S) array (attns[:, h] equals the h-th entry of the PyTorch
    tuple), or None when return_attn=False.
    """
    B, S, dim_in = query.shape
    wq, bq, wk, bk, wv, bv, w_lin, b_lin = params
    H, dim_q, _ = wq.shape
    dim_k = wk.shape[1]
    # The reference q.bmm(k.T) requires matching head dims.
    assert dim_q == dim_k, "scaled_dot_product_attention requires dim_q == dim_k"
    assert w_lin.shape == (dim_in, H * dim_k)

    cdt = jnp.dtype(compute_dtype)
    adt = jnp.dtype(attn_dtype)
    has_mask = mask is not None
    inv_scale = 1.0 / math.sqrt(float(dim_q))

    dqp = _round_up(dim_q, 128)          # pad head dims to full MXU lanes
    dkp = _round_up(dim_k, 128)
    TQ = _pick_q_tile(S)
    n_q = S // TQ

    # ---- one-time weight repacking (PyTorch (out,in) -> (in,out), head dims
    # zero-padded to 128: zeros contribute nothing, numerically exact). -------
    def _pack_qkv(w, b, dp):
        wp = jnp.transpose(w, (0, 2, 1))                          # (H, dim_in, d)
        wp = jnp.pad(wp, ((0, 0), (0, 0), (0, dp - w.shape[1])))
        bp = jnp.pad(b, ((0, 0), (0, dp - b.shape[1])))
        return wp.astype(cdt), bp.reshape(H, 1, dp).astype(jnp.float32)

    wq_p, bq_p = _pack_qkv(wq, bq, dqp)
    wk_p, bk_p = _pack_qkv(wk, bk, dkp)
    wv_p, bv_p = _pack_qkv(wv, bv, dkp)
    # concat @ W_lin.T == sum_h ctx_h @ W_lin[:, h*dk:(h+1)*dk].T
    wo_p = jnp.transpose(w_lin.reshape(dim_in, H, dim_k), (1, 2, 0))  # (H, dk, dim_in)
    wo_p = jnp.pad(wo_p, ((0, 0), (0, dkp - dim_k), (0, 0))).astype(cdt)
    bo_p = b_lin.reshape(1, dim_in).astype(jnp.float32)

    q_in = query.astype(cdt)
    k_in = key.astype(cdt)
    v_in = value.astype(cdt)

    contract_last = (((1,), (1,)), ((), ()))   # a @ b.T without materializing b.T

    def kernel(*refs):
        i = 3
        xq_ref, xk_ref, xv_ref = refs[:3]
        if has_mask:
            mask_ref = refs[i]
            i += 1
        (wq_ref, bq_ref, wk_ref, bk_ref, wv_ref, bv_ref,
         wo_ref, bo_ref) = refs[i:i + 8]
        i += 8
        out_ref = refs[i]
        i += 1
        attn_ref = refs[i] if return_attn else None
        acc_ref = refs[-1]

        h = pl.program_id(2)

        @pl.when(h == 0)
        def _():
            acc_ref[...] = jnp.zeros_like(acc_ref)

        # Per-head projections (padded to 128 output lanes), f32 accumulation.
        # 1/sqrt(dim_q) is folded into q once.
        q = (jnp.dot(xq_ref[0], wq_ref[0], preferred_element_type=jnp.float32)
             + bq_ref[0]) * inv_scale                                  # (TQ, dqp)
        k = (jnp.dot(xk_ref[0], wk_ref[0], preferred_element_type=jnp.float32)
             + bk_ref[0])                                              # (S, dkp)
        v = (jnp.dot(xv_ref[0], wv_ref[0], preferred_element_type=jnp.float32)
             + bv_ref[0])                                              # (S, dkp)

        s = lax.dot_general(q.astype(cdt), k.astype(cdt), contract_last,
                            preferred_element_type=jnp.float32)        # (TQ, S)
        if has_mask:
            # PyTorch adds mask*(-1e9) before dividing by sqrt(dim_q); the
            # scale was folded into q, so fold it into the mask constant too.
            s = s + mask_ref[0] * jnp.float32(-1e9 * inv_scale)

        m = jnp.max(s, axis=-1, keepdims=True)
        e = jnp.exp(s - m)                                             # EUP
        denom = jnp.sum(e, axis=-1, keepdims=True)

        if return_attn:
            # Exact normalization for the user-visible probabilities.
            attn_ref[0, 0] = (e * (1.0 / denom)).astype(attn_ref.dtype)

        # Approximate EUP reciprocal is fine for the hidden ctx normalization;
        # probabilities (and v) in bf16 double MXU throughput, acc stays f32.
        inv_l = pl.reciprocal(denom, approx=True)
        ctx = jnp.dot(e.astype(jnp.bfloat16), v.astype(jnp.bfloat16),
                      preferred_element_type=jnp.float32) * inv_l       # (TQ, dkp)

        # Fused output projection: concat @ W_lin.T == sum_h ctx_h @ W_lin.T[h].
        acc_ref[...] += jnp.dot(ctx.astype(cdt), wo_ref[0],
                                preferred_element_type=jnp.float32)     # (TQ, dim_in)

        @pl.when(h == H - 1)
        def _():
            out_ref[0] = (acc_ref[...] + bo_ref[...]).astype(out_ref.dtype)

    # ---- specs --------------------------------------------------------------
    x_q_spec = pl.BlockSpec((1, TQ, dim_in), lambda b, qi, h: (b, qi, 0))
    x_kv_spec = pl.BlockSpec((1, S, dim_in), lambda b, qi, h: (b, 0, 0))
    in_specs = [x_q_spec, x_kv_spec, x_kv_spec]
    inputs = [q_in, k_in, v_in]

    mask_f = None
    if has_mask:
        mask_f = jnp.asarray(mask, jnp.float32)
        if mask_f.ndim == 2:
            mask_f = mask_f[None]                       # (1, S, S) — no B broadcast
        assert mask_f.shape[-2:] == (S, S)
        if mask_f.shape[0] == 1:
            m_spec = pl.BlockSpec((1, TQ, S), lambda b, qi, h: (0, qi, 0))
        else:
            assert mask_f.shape[0] == B
            m_spec = pl.BlockSpec((1, TQ, S), lambda b, qi, h: (b, qi, 0))
        in_specs.append(m_spec)
        inputs.append(mask_f)

    def _head_spec(shape):
        nz = len(shape) - 1
        return pl.BlockSpec((1,) + tuple(shape[1:]),
                            lambda b, qi, h: (h,) + (0,) * nz)

    weight_args = [wq_p, bq_p, wk_p, bk_p, wv_p, bv_p, wo_p]
    in_specs += [_head_spec(w.shape) for w in weight_args]
    inputs += weight_args
    in_specs.append(pl.BlockSpec((1, dim_in), lambda b, qi, h: (0, 0)))
    inputs.append(bo_p)

    out_spec = pl.BlockSpec((1, TQ, dim_in), lambda b, qi, h: (b, qi, 0))
    if return_attn:
        out_shape = (jax.ShapeDtypeStruct((B, S, dim_in), jnp.float32),
                     jax.ShapeDtypeStruct((B, H, S, S), adt))
        out_specs = [out_spec,
                     pl.BlockSpec((1, 1, TQ, S), lambda b, qi, h: (b, h, qi, 0))]
    else:
        out_shape = jax.ShapeDtypeStruct((B, S, dim_in), jnp.float32)
        out_specs = out_spec

    # ---- VMEM budget (per-step blocks x2 double-buffer + body temps) --------
    cdt_b, adt_b = cdt.itemsize, adt.itemsize
    blk = (TQ * dim_in * cdt_b                        # q tile
           + 2 * S * dim_in * cdt_b                   # k, v
           + (TQ * S * 4 if has_mask else 0)          # mask tile
           + dim_in * (dqp + 2 * dkp) * cdt_b         # wq/wk/wv head blocks
           + dkp * dim_in * cdt_b                     # wo head block
           + (dqp + 2 * dkp + dim_in) * 4             # biases
           + TQ * dim_in * 4                          # out tile
           + (TQ * S * adt_b if return_attn else 0))  # attn tile
    body = (3 * TQ * S * 4                            # s / e / probs
            + (TQ * dqp + 2 * S * dkp + TQ * dkp) * 4  # proj / ctx temps
            + TQ * dim_in * 4)                        # acc scratch
    vmem_limit = int(min(max(int((2 * blk + body) * 1.5), 32 << 20), 64 << 20))

    flops = (2 * B * S * dim_in * H * dqp                    # Q projections
             + 2 * B * n_q * S * dim_in * H * 2 * dkp        # K/V proj (per q-tile)
             + 2 * B * H * S * S * (dqp + dkp)               # scores + ctx
             + 2 * B * S * H * dkp * dim_in)                 # output projection
    bytes_accessed = (3 * B * S * dim_in * cdt_b
                      + H * dim_in * (dqp + 3 * dkp) * cdt_b
                      + B * S * dim_in * 4
                      + (B * H * S * S * adt_b if return_attn else 0)
                      + (int(np.prod(mask_f.shape)) * 4 if has_mask else 0))

    result = pl.pallas_call(
        kernel,
        out_shape=out_shape,
        grid_spec=pltpu.PrefetchScalarGridSpec(
            num_scalar_prefetch=0,
            grid=(B, n_q, H),
            in_specs=in_specs,
            out_specs=out_specs,
            scratch_shapes=[pltpu.VMEM((TQ, dim_in), jnp.float32)],
        ),
        compiler_params=pltpu.CompilerParams(
            dimension_semantics=("parallel", "parallel", "arbitrary"),
            vmem_limit_bytes=vmem_limit),
        cost_estimate=pl.CostEstimate(
            flops=int(flops),
            transcendentals=int(B * H * S * S),
            bytes_accessed=int(bytes_accessed)),
    )(*inputs)

    if return_attn:
        output, attns = result
        return output, attns
    return result, None


def init_params(key, num_heads, dim_in, dim_q, dim_k):
    ks = jax.random.split(key, 8)
    scale = 1.0 / np.sqrt(dim_in)
    wq = jax.random.uniform(ks[0], (num_heads, dim_q, dim_in), jnp.float32, -scale, scale)
    bq = jax.random.uniform(ks[1], (num_heads, dim_q), jnp.float32, -scale, scale)
    wk = jax.random.uniform(ks[2], (num_heads, dim_k, dim_in), jnp.float32, -scale, scale)
    bk = jax.random.uniform(ks[3], (num_heads, dim_k), jnp.float32, -scale, scale)
    wv = jax.random.uniform(ks[4], (num_heads, dim_k, dim_in), jnp.float32, -scale, scale)
    bv = jax.random.uniform(ks[5], (num_heads, dim_k), jnp.float32, -scale, scale)
    scale_o = 1.0 / np.sqrt(num_heads * dim_k)
    w_lin = jax.random.uniform(ks[6], (dim_in, num_heads * dim_k), jnp.float32, -scale_o, scale_o)
    b_lin = jax.random.uniform(ks[7], (dim_in,), jnp.float32, -scale_o, scale_o)
    return (wq, bq, wk, bk, wv, bv, w_lin, b_lin)


def _reference(query, key, value, params, mask=None):
    """Pure-JAX replica of the PyTorch module."""
    wq, bq, wk, bk, wv, bv, w_lin, b_lin = params
    H, dim_q, _ = wq.shape
    outs, attns = [], []
    for h in range(H):
        q = query @ wq[h].T + bq[h]
        k = key @ wk[h].T + bk[h]
        v = value @ wv[h].T + bv[h]
        t = jnp.einsum("bsd,btd->bst", q, k)
        if mask is not None:
            t = t + mask * (-1e9)
        a = jax.nn.softmax(t / (dim_q ** 0.5), axis=-1)
        outs.append(jnp.einsum("bst,btd->bsd", a, v))
        attns.append(a)
    cat = jnp.concatenate(outs, axis=-1)
    return cat @ w_lin.T + b_lin, attns


if __name__ == "__main__":
    B, S, dim_in, dim_q, dim_k, H = 2, 8, 32, 16, 16, 4
    key0 = jax.random.PRNGKey(0)
    kq, kk, kv, kp = jax.random.split(key0, 4)
    query = jax.random.normal(kq, (B, S, dim_in), jnp.float32)
    key_t = jax.random.normal(kk, (B, S, dim_in), jnp.float32)
    value = jax.random.normal(kv, (B, S, dim_in), jnp.float32)
    params = init_params(kp, H, dim_in, dim_q, dim_k)

    ref_out, ref_attns = _reference(query, key_t, value, params, mask=None)

    # 1) f32 path, no mask, f32 attention probabilities (PyTorch semantics).
    out, attns = multi_head_attention(query, key_t, value, params, mask=None)
    out = jax.block_until_ready(out)
    attns = jax.block_until_ready(attns)
    assert np.allclose(np.asarray(out), np.asarray(ref_out), atol=1e-2, rtol=1e-2)
    for h in range(H):
        assert np.allclose(np.asarray(attns[:, h]), np.asarray(ref_attns[h]),
                           atol=5e-3, rtol=5e-3)

    # 2) f32 path with a batch-invariant (S, S) causal mask (stays (1,S,S) in HBM).
    mask = (jnp.arange(S)[None, :] > jnp.arange(S)[:, None]).astype(jnp.float32)
    out_m, attns_m = multi_head_attention(query, key_t, value, params, mask=mask)
    out_m = jax.block_until_ready(out_m)
    ref_out_m, ref_attns_m = _reference(query, key_t, value, params, mask=mask)
    assert np.allclose(np.asarray(out_m), np.asarray(ref_out_m), atol=1e-2, rtol=1e-2)
    for h in range(H):
        assert np.allclose(np.asarray(attns_m[:, h]), np.asarray(ref_attns_m[h]),
                           atol=5e-3, rtol=5e-3)

    # 3) bf16 attention-probability storage (bandwidth knob), masked.
    out_b, attns_b = multi_head_attention(query, key_t, value, params, mask=mask,
                                          attn_dtype=jnp.bfloat16)
    attns_b = jax.block_until_ready(attns_b)
    for h in range(H):
        assert np.allclose(np.asarray(attns_b[:, h]).astype(np.float32),
                           np.asarray(ref_attns_m[h]), atol=1e-2, rtol=1e-2)

    # 4) Fast path: bf16 MXU operands everywhere, no attention writeback.
    out_fast, attns_none = multi_head_attention(
        query, key_t, value, params, mask=None,
        return_attn=False, compute_dtype=jnp.bfloat16)
    out_fast = jax.block_until_ready(out_fast)
    assert attns_none is None
    assert np.allclose(np.asarray(out_fast), np.asarray(ref_out), atol=7e-2, rtol=7e-2)

    print("KERNEL_OK")
</pallas_src>

<mosaic_0001>
module attributes {stable_mosaic.version = 11 : i64} {
  func.func @kernel(%arg0: i32, %arg1: i32, %arg2: i32, %arg3: memref<1x8x32xf32, #tpu.memory_space<vmem>>, %arg4: memref<1x8x32xf32, #tpu.memory_space<vmem>>, %arg5: memref<1x8x32xf32, #tpu.memory_space<vmem>>, %arg6: memref<1x32x128xf32, #tpu.memory_space<vmem>>, %arg7: memref<1x1x128xf32, #tpu.memory_space<vmem>>, %arg8: memref<1x32x128xf32, #tpu.memory_space<vmem>>, %arg9: memref<1x1x128xf32, #tpu.memory_space<vmem>>, %arg10: memref<1x32x128xf32, #tpu.memory_space<vmem>>, %arg11: memref<1x1x128xf32, #tpu.memory_space<vmem>>, %arg12: memref<1x128x32xf32, #tpu.memory_space<vmem>>, %arg13: memref<1x32xf32, #tpu.memory_space<vmem>>, %arg14: memref<1x8x32xf32, #tpu.memory_space<vmem>>, %arg15: memref<1x1x8x8xf32, #tpu.memory_space<vmem>>, %arg16: memref<8x32xf32, #tpu.memory_space<vmem>>) attributes {dimension_semantics = [#tpu.dimension_semantics<parallel>, #tpu.dimension_semantics<parallel>, #tpu.dimension_semantics<arbitrary>], iteration_bounds = array<i64: 2, 1, 4>, scalar_prefetch = 0 : i64, scratch_operands = 1 : i64, tpu.core_type = #tpu.core_type<tc>, window_params = [{transform_indices = @transform_0, window_bounds = array<i64: 1, 8, 32>}, {transform_indices = @transform_1, window_bounds = array<i64: 1, 8, 32>}, {transform_indices = @transform_2, window_bounds = array<i64: 1, 8, 32>}, {transform_indices = @transform_3, window_bounds = array<i64: 1, 32, 128>}, {transform_indices = @transform_4, window_bounds = array<i64: 1, 1, 128>}, {transform_indices = @transform_5, window_bounds = array<i64: 1, 32, 128>}, {transform_indices = @transform_6, window_bounds = array<i64: 1, 1, 128>}, {transform_indices = @transform_7, window_bounds = array<i64: 1, 32, 128>}, {transform_indices = @transform_8, window_bounds = array<i64: 1, 1, 128>}, {transform_indices = @transform_9, window_bounds = array<i64: 1, 128, 32>}, {pipeline_mode = #tpu.pipeline_mode<synchronous>, transform_indices = @transform_10, window_bounds = array<i64: 1, 32>}, {transform_indices = @transform_11, window_bounds = array<i64: 1, 8, 32>}, {transform_indices = @transform_12, window_bounds = array<i64: 1, 1, 8, 8>}]} {
    %c0_i32 = arith.constant 0 : i32
    %0 = arith.cmpi eq, %arg2, %c0_i32 : i32
    %1 = arith.extui %0 : i1 to i32
    %c0_i32_0 = arith.constant 0 : i32
    %2 = arith.cmpi ne, %1, %c0_i32_0 : i32
    scf.if %2 {
      %cst_48 = arith.constant 0.000000e+00 : f32
      %62 = vector.broadcast %cst_48 : f32 to vector<8x32xf32>
      %c0_49 = arith.constant 0 : index
      %c0_50 = arith.constant 0 : index
      %63 = vector.load %arg16[%c0_49, %c0_50] : memref<8x32xf32, #tpu.memory_space<vmem>>, vector<8x32xf32>
      tpu.vector_store %arg16[%c0_49, %c0_50], %62 {strides = array<i32>} : memref<8x32xf32, #tpu.memory_space<vmem>>, vector<8x32xf32>,
    } else {
    }
    %c0 = arith.constant 0 : index
    %c0_1 = arith.constant 0 : index
    %c0_2 = arith.constant 0 : index
    %3 = vector.load %arg3[%c0, %c0_1, %c0_2] : memref<1x8x32xf32, #tpu.memory_space<vmem>>, vector<1x8x32xf32>
    %4 = vector.shape_cast %3 : vector<1x8x32xf32> to vector<8x32xf32>
    %c0_3 = arith.constant 0 : index
    %c0_4 = arith.constant 0 : index
    %c0_5 = arith.constant 0 : index
    %5 = vector.load %arg6[%c0_3, %c0_4, %c0_5] : memref<1x32x128xf32, #tpu.memory_space<vmem>>, vector<1x32x128xf32>
    %6 = vector.shape_cast %5 : vector<1x32x128xf32> to vector<32x128xf32>
    %cst = arith.constant dense<0.000000e+00> : vector<8x128xf32>
    %7 = tpu.matmul %4, %6, %cst {dimension_numbers = #tpu.dot_dimension_numbers<[1], [0], [0], [1], [0, 0, 1, 1], [], []>} : vector<8x32xf32>, vector<32x128xf32>, vector<8x128xf32> -> vector<8x128xf32>
    %c0_6 = arith.constant 0 : index
    %c0_7 = arith.constant 0 : index
    %c0_8 = arith.constant 0 : index
    %8 = vector.load %arg7[%c0_6, %c0_7, %c0_8] : memref<1x1x128xf32, #tpu.memory_space<vmem>>, vector<1x1x128xf32>
    %9 = vector.shape_cast %8 : vector<1x1x128xf32> to vector<1x128xf32>
    %10 = vector.broadcast %9 : vector<1x128xf32> to vector<8x128xf32>
    %11 = arith.addf %7, %10 : vector<8x128xf32>
    %cst_9 = arith.constant 2.500000e-01 : f32
    %12 = vector.broadcast %cst_9 : f32 to vector<8x128xf32>
    %13 = arith.mulf %11, %12 : vector<8x128xf32>
    %c0_10 = arith.constant 0 : index
    %c0_11 = arith.constant 0 : index
    %c0_12 = arith.constant 0 : index
    %14 = vector.load %arg4[%c0_10, %c0_11, %c0_12] : memref<1x8x32xf32, #tpu.memory_space<vmem>>, vector<1x8x32xf32>
    %15 = vector.shape_cast %14 : vector<1x8x32xf32> to vector<8x32xf32>
    %c0_13 = arith.constant 0 : index
    %c0_14 = arith.constant 0 : index
    %c0_15 = arith.constant 0 : index
    %16 = vector.load %arg8[%c0_13, %c0_14, %c0_15] : memref<1x32x128xf32, #tpu.memory_space<vmem>>, vector<1x32x128xf32>
    %17 = vector.shape_cast %16 : vector<1x32x128xf32> to vector<32x128xf32>
    %cst_16 = arith.constant dense<0.000000e+00> : vector<8x128xf32>
    %18 = tpu.matmul %15, %17, %cst_16 {dimension_numbers = #tpu.dot_dimension_numbers<[1], [0], [0], [1], [0, 0, 1, 1], [], []>} : vector<8x32xf32>, vector<32x128xf32>, vector<8x128xf32> -> vector<8x128xf32>
    %c0_17 = arith.constant 0 : index
    %c0_18 = arith.constant 0 : index
    %c0_19 = arith.constant 0 : index
    %19 = vector.load %arg9[%c0_17, %c0_18, %c0_19] : memref<1x1x128xf32, #tpu.memory_space<vmem>>, vector<1x1x128xf32>
    %20 = vector.shape_cast %19 : vector<1x1x128xf32> to vector<1x128xf32>
    %21 = vector.broadcast %20 : vector<1x128xf32> to vector<8x128xf32>
    %22 = arith.addf %18, %21 : vector<8x128xf32>
    %c0_20 = arith.constant 0 : index
    %c0_21 = arith.constant 0 : index
    %c0_22 = arith.constant 0 : index
    %23 = vector.load %arg5[%c0_20, %c0_21, %c0_22] : memref<1x8x32xf32, #tpu.memory_space<vmem>>, vector<1x8x32xf32>
    %24 = vector.shape_cast %23 : vector<1x8x32xf32> to vector<8x32xf32>
    %c0_23 = arith.constant 0 : index
    %c0_24 = arith.constant 0 : index
    %c0_25 = arith.constant 0 : index
    %25 = vector.load %arg10[%c0_23, %c0_24, %c0_25] : memref<1x32x128xf32, #tpu.memory_space<vmem>>, vector<1x32x128xf32>
    %26 = vector.shape_cast %25 : vector<1x32x128xf32> to vector<32x128xf32>
    %cst_26 = arith.constant dense<0.000000e+00> : vector<8x128xf32>
    %27 = tpu.matmul %24, %26, %cst_26 {dimension_numbers = #tpu.dot_dimension_numbers<[1], [0], [0], [1], [0, 0, 1, 1], [], []>} : vector<8x32xf32>, vector<32x128xf32>, vector<8x128xf32> -> vector<8x128xf32>
    %c0_27 = arith.constant 0 : index
    %c0_28 = arith.constant 0 : index
    %c0_29 = arith.constant 0 : index
    %28 = vector.load %arg11[%c0_27, %c0_28, %c0_29] : memref<1x1x128xf32, #tpu.memory_space<vmem>>, vector<1x1x128xf32>
    %29 = vector.shape_cast %28 : vector<1x1x128xf32> to vector<1x128xf32>
    %30 = vector.broadcast %29 : vector<1x128xf32> to vector<8x128xf32>
    %31 = arith.addf %27, %30 : vector<8x128xf32>
    %cst_30 = arith.constant dense<0.000000e+00> : vector<8x8xf32>
    %32 = tpu.matmul %13, %22, %cst_30 {dimension_numbers = #tpu.dot_dimension_numbers<[1], [1], [0], [0], [0, 0, 1, 0], [], []>} : vector<8x128xf32>, vector<8x128xf32>, vector<8x8xf32> -> vector<8x8xf32>
    %cst_31 = arith.constant dense<0xFF800000> : vector<8xf32>
    %33 = vector.multi_reduction <maximumf>, %32, %cst_31 [1] : vector<8x8xf32> to vector<8xf32>
    %34 = vector.shape_cast %33 : vector<8xf32> to vector<8x1xf32>
    %35 = vector.broadcast %34 : vector<8x1xf32> to vector<8x8xf32>
    %36 = arith.subf %32, %35 : vector<8x8xf32>
    %37 = math.exp %36 : vector<8x8xf32>
    %cst_32 = arith.constant dense<0.000000e+00> : vector<8xf32>
    %38 = vector.multi_reduction <add>, %37, %cst_32 [1] : vector<8x8xf32> to vector<8xf32>
    %39 = vector.shape_cast %38 : vector<8xf32> to vector<8x1xf32>
    %cst_33 = arith.constant 1.000000e+00 : f32
    %40 = vector.broadcast %cst_33 : f32 to vector<8x1xf32>
    %41 = arith.divf %40, %39 : vector<8x1xf32>
    %42 = vector.broadcast %41 : vector<8x1xf32> to vector<8x8xf32>
    %43 = arith.mulf %37, %42 : vector<8x8xf32>
    %c0_34 = arith.constant 0 : index
    %c0_35 = arith.constant 0 : index
    %c0_36 = arith.constant 0 : index
    %c0_37 = arith.constant 0 : index
    %44 = vector.load %arg15[%c0_34, %c0_35, %c0_36, %c0_37] : memref<1x1x8x8xf32, #tpu.memory_space<vmem>>, vector<1x1x8x8xf32>
    %45 = vector.shape_cast %44 : vector<1x1x8x8xf32> to vector<8x8xf32>
    %46 = vector.shape_cast %43 : vector<8x8xf32> to vector<1x1x8x8xf32>
    tpu.vector_store %arg15[%c0_34, %c0_35, %c0_36, %c0_37], %46 {strides = array<i32>} : memref<1x1x8x8xf32, #tpu.memory_space<vmem>>, vector<1x1x8x8xf32>,
    %47 = tpu.reciprocal %39 {approx = true} : vector<8x1xf32> -> vector<8x1xf32>
    %48 = arith.truncf %37 : vector<8x8xf32> to vector<8x8xbf16>
    %49 = arith.truncf %31 : vector<8x128xf32> to vector<8x128xbf16>
    %cst_38 = arith.constant dense<0.000000e+00> : vector<8x128xf32>
    %50 = tpu.matmul %48, %49, %cst_38 {dimension_numbers = #tpu.dot_dimension_numbers<[1], [0], [0], [1], [0, 0, 1, 1], [], []>} : vector<8x8xbf16>, vector<8x128xbf16>, vector<8x128xf32> -> vector<8x128xf32>
    %51 = vector.broadcast %47 : vector<8x1xf32> to vector<8x128xf32>
    %52 = arith.mulf %50, %51 : vector<8x128xf32>
    %c0_39 = arith.constant 0 : index
    %c0_40 = arith.constant 0 : index
    %53 = vector.load %arg16[%c0_39, %c0_40] : memref<8x32xf32, #tpu.memory_space<vmem>>, vector<8x32xf32>
    %c0_41 = arith.constant 0 : index
    %c0_42 = arith.constant 0 : index
    %c0_43 = arith.constant 0 : index
    %54 = vector.load %arg12[%c0_41, %c0_42, %c0_43] : memref<1x128x32xf32, #tpu.memory_space<vmem>>, vector<1x128x32xf32>
    %55 = vector.shape_cast %54 : vector<1x128x32xf32> to vector<128x32xf32>
    %cst_44 = arith.constant dense<0.000000e+00> : vector<8x32xf32>
    %56 = tpu.matmul %52, %55, %cst_44 {dimension_numbers = #tpu.dot_dimension_numbers<[1], [0], [0], [1], [0, 0, 1, 1], [], []>} : vector<8x128xf32>, vector<128x32xf32>, vector<8x32xf32> -> vector<8x32xf32>
    %57 = arith.addf %53, %56 : vector<8x32xf32>
    %c0_45 = arith.constant 0 : index
    %c0_46 = arith.constant 0 : index
    %58 = vector.load %arg16[%c0_45, %c0_46] : memref<8x32xf32, #tpu.memory_space<vmem>>, vector<8x32xf32>
    tpu.vector_store %arg16[%c0_45, %c0_46], %57 {strides = array<i32>} : memref<8x32xf32, #tpu.memory_space<vmem>>, vector<8x32xf32>,
    %c3_i32 = arith.constant 3 : i32
    %59 = arith.cmpi eq, %arg2, %c3_i32 : i32
    %60 = arith.extui %59 : i1 to i32
    %c0_i32_47 = arith.constant 0 : i32
    %61 = arith.cmpi ne, %60, %c0_i32_47 : i32
    scf.if %61 {
      %c0_48 = arith.constant 0 : index
      %c0_49 = arith.constant 0 : index
      %62 = vector.load %arg16[%c0_48, %c0_49] : memref<8x32xf32, #tpu.memory_space<vmem>>, vector<8x32xf32>
      %c0_50 = arith.constant 0 : index
      %c0_51 = arith.constant 0 : index
      %63 = vector.load %arg13[%c0_50, %c0_51] : memref<1x32xf32, #tpu.memory_space<vmem>>, vector<1x32xf32>
      %64 = vector.broadcast %63 : vector<1x32xf32> to vector<8x32xf32>
      %65 = arith.addf %62, %64 : vector<8x32xf32>
      %c0_52 = arith.constant 0 : index
      %c0_53 = arith.constant 0 : index
      %c0_54 = arith.constant 0 : index
      %66 = vector.load %arg14[%c0_52, %c0_53, %c0_54] : memref<1x8x32xf32, #tpu.memory_space<vmem>>, vector<1x8x32xf32>
      %67 = vector.shape_cast %66 : vector<1x8x32xf32> to vector<8x32xf32>
      %68 = vector.shape_cast %65 : vector<8x32xf32> to vector<1x8x32xf32>
      tpu.vector_store %arg14[%c0_52, %c0_53, %c0_54], %68 {strides = array<i32>} : memref<1x8x32xf32, #tpu.memory_space<vmem>>, vector<1x8x32xf32>,
    } else {
    }
    return
  }
  func.func @transform_0(%arg0: i32, %arg1: i32, %arg2: i32) -> (i32, i32, i32) {
    %c0_i32 = arith.constant 0 : i32
    %c0_i32_0 = arith.constant 0 : i32
    return %arg0, %arg1, %c0_i32 : i32, i32, i32
  }
  func.func @transform_1(%arg0: i32, %arg1: i32, %arg2: i32) -> (i32, i32, i32) {
    %c0_i32 = arith.constant 0 : i32
    %c0_i32_0 = arith.constant 0 : i32
    %c0_i32_1 = arith.constant 0 : i32
    return %arg0, %c0_i32, %c0_i32_0 : i32, i32, i32
  }
  func.func @transform_2(%arg0: i32, %arg1: i32, %arg2: i32) -> (i32, i32, i32) {
    %c0_i32 = arith.constant 0 : i32
    %c0_i32_0 = arith.constant 0 : i32
    %c0_i32_1 = arith.constant 0 : i32
    return %arg0, %c0_i32, %c0_i32_0 : i32, i32, i32
  }
  func.func @transform_3(%arg0: i32, %arg1: i32, %arg2: i32) -> (i32, i32, i32) {
    %c0_i32 = arith.constant 0 : i32
    %c0_i32_0 = arith.constant 0 : i32
    %c0_i32_1 = arith.constant 0 : i32
    return %arg2, %c0_i32, %c0_i32_0 : i32, i32, i32
  }
  func.func @transform_4(%arg0: i32, %arg1: i32, %arg2: i32) -> (i32, i32, i32) {
    %c0_i32 = arith.constant 0 : i32
    %c0_i32_0 = arith.constant 0 : i32
    %c0_i32_1 = arith.constant 0 : i32
    return %arg2, %c0_i32, %c0_i32_0 : i32, i32, i32
  }
  func.func @transform_5(%arg0: i32, %arg1: i32, %arg2: i32) -> (i32, i32, i32) {
    %c0_i32 = arith.constant 0 : i32
    %c0_i32_0 = arith.constant 0 : i32
    %c0_i32_1 = arith.constant 0 : i32
    return %arg2, %c0_i32, %c0_i32_0 : i32, i32, i32
  }
  func.func @transform_6(%arg0: i32, %arg1: i32, %arg2: i32) -> (i32, i32, i32) {
    %c0_i32 = arith.constant 0 : i32
    %c0_i32_0 = arith.constant 0 : i32
    %c0_i32_1 = arith.constant 0 : i32
    return %arg2, %c0_i32, %c0_i32_0 : i32, i32, i32
  }
  func.func @transform_7(%arg0: i32, %arg1: i32, %arg2: i32) -> (i32, i32, i32) {
    %c0_i32 = arith.constant 0 : i32
    %c0_i32_0 = arith.constant 0 : i32
    %c0_i32_1 = arith.constant 0 : i32
    return %arg2, %c0_i32, %c0_i32_0 : i32, i32, i32
  }
  func.func @transform_8(%arg0: i32, %arg1: i32, %arg2: i32) -> (i32, i32, i32) {
    %c0_i32 = arith.constant 0 : i32
    %c0_i32_0 = arith.constant 0 : i32
    %c0_i32_1 = arith.constant 0 : i32
    return %arg2, %c0_i32, %c0_i32_0 : i32, i32, i32
  }
  func.func @transform_9(%arg0: i32, %arg1: i32, %arg2: i32) -> (i32, i32, i32) {
    %c0_i32 = arith.constant 0 : i32
    %c0_i32_0 = arith.constant 0 : i32
    %c0_i32_1 = arith.constant 0 : i32
    return %arg2, %c0_i32, %c0_i32_0 : i32, i32, i32
  }
  func.func @transform_10(%arg0: i32, %arg1: i32, %arg2: i32) -> (i32, i32) {
    %c0_i32 = arith.constant 0 : i32
    %c0_i32_0 = arith.constant 0 : i32
    %c0_i32_1 = arith.constant 0 : i32
    return %c0_i32, %c0_i32_0 : i32, i32
  }
  func.func @transform_11(%arg0: i32, %arg1: i32, %arg2: i32) -> (i32, i32, i32) {
    %c0_i32 = arith.constant 0 : i32
    %c0_i32_0 = arith.constant 0 : i32
    return %arg0, %arg1, %c0_i32 : i32, i32, i32
  }
  func.func @transform_12(%arg0: i32, %arg1: i32, %arg2: i32) -> (i32, i32, i32, i32) {
    %c0_i32 = arith.constant 0 : i32
    %c0_i32_0 = arith.constant 0 : i32
    return %arg0, %arg2, %arg1, %c0_i32 : i32, i32, i32, i32
  }
}

</mosaic_0001>

<llo_original>
// kernel: tpu_custom_call.1
$region0: #{tpu_custom_call.1}
  #allocation0 [shape = 'u32[]', space=smem, size = 0x4, offset = 0x4, fixed_abs, tag = 'smem constant byte address 0x4 - core index']
  #allocation1 [shape = 'u32[144,128]{1,0:T(1,128)}', space=vmem, size = 0x12000, scoped, tag = 'internal scratch']
  #allocation2 [shape = 'f32[8,32]{1,0:T(8,128)}', space=vmem, size = 0x1000, scoped, tag = 'scratch operand']
  %s0 = inlined_call_operand.vmem [shape: f32[2,8,32], index: 0, kind: input, shape index: {}]
  %s1 = inlined_call_operand.vmem [shape: f32[2,8,32], index: 1, kind: input, shape index: {}]
  %s2 = inlined_call_operand.vmem [shape: f32[2,8,32], index: 2, kind: input, shape index: {}]
  %s3 = inlined_call_operand.vmem [shape: f32[4,32,128], index: 3, kind: input, shape index: {}]
  %s4 = inlined_call_operand.vmem [shape: f32[4,1,128], index: 4, kind: input, shape index: {}]
  %s5 = inlined_call_operand.vmem [shape: f32[4,32,128], index: 5, kind: input, shape index: {}]
  %s6 = inlined_call_operand.vmem [shape: f32[4,1,128], index: 6, kind: input, shape index: {}]
  %s7 = inlined_call_operand.vmem [shape: f32[4,32,128], index: 7, kind: input, shape index: {}]
  %s8 = inlined_call_operand.vmem [shape: f32[4,1,128], index: 8, kind: input, shape index: {}]
  %s9 = inlined_call_operand.vmem [shape: f32[4,128,32], index: 9, kind: input, shape index: {}]
  %s10 = inlined_call_operand.vmem [shape: f32[1,32], index: 10, kind: input, shape index: {}]
  %s11 = inlined_call_operand.hbm [shape: f32[2,8,32], index: 11, kind: output, shape index: {0}]
  %s12 = inlined_call_operand.hbm [shape: f32[2,4,8,8], index: 12, kind: output, shape index: {1}]
  %13 = xla_tuple %s11, %s12
  %s14 = sld [smem:[#allocation0]]
  $region93: #{tpu_custom_call.1} parent=0
    _
  %s16 = ssub.s32 1, %s14
  %s17 = scalar_select 0, %s16, %s14
  $region1: #{tpu_custom_call.1} parent=0
    #allocation3 [shape = 'u8[8192]{0}', space=vmem, size = 0x2000, scoped, tag = 'output window, operand 0']
    #allocation4 [shape = 's32[2]{0}', space=sflag, size = 0x8, scoped, tag = 'scoped memory for tpu_custom_call.1']
    #allocation5 [shape = 'u8[8192]{0}', space=vmem, size = 0x2000, scoped, tag = 'output window, operand 1']
    #allocation6 [shape = 's32[2]{0}', space=sflag, size = 0x8, scoped, tag = 'scoped memory for tpu_custom_call.1']
    %18 = vsyncpa [#allocation4], 0
    %s19 = scalar_lea.sflag [#allocation4], 1
    %20 = vsyncpa %s19, 0
    %21 = vsyncpa [#allocation6], 0
    %s22 = scalar_lea.sflag [#allocation6], 1
    %23 = vsyncpa %s22, 0
    loop: start=0, step=1, limit=10
    $region2: #{tpu_custom_call.1} parent=1 // loop_pre_header
      _
    $region3: #{tpu_custom_call.1} parent=1 // loop_header
      %s25 = sphi 0, %s29
      %p26 = scmp.ge.s32.totalorder %s25, 10
      %s32 = sphi 0, %s51
      %s33 = sphi 0, %s47
      %s34 = sphi 0, %s43
      %s35 = sphi 0, %s32
      %s36 = sphi 0, %s33
      %s37 = sphi 0, %s34
      %s38 = sphi 0, %s35
      %s39 = sphi 0, %s36
      %s40 = sphi 0, %s37
      %s56 = sphi 0, %s58
      %s59 = sphi 0, %s56
      %s60 = sphi 0, %s59
      %s76 = sphi 0, %s60
      %s82 = sphi 0, %s84
      %s85 = sphi 0, %s82
      %s86 = sphi 0, %s85
      %s102 = sphi 0, %s86
      %s108 = sphi 0, %s110
      %s111 = sphi 0, %s108
      %s112 = sphi 0, %s111
      %s128 = sphi 0, %s112
      %s134 = sphi 0, %s136
      %s137 = sphi 0, %s134
      %s138 = sphi 0, %s137
      %s154 = sphi 0, %s138
      %s160 = sphi 0, %s162
      %s163 = sphi 0, %s160
      %s164 = sphi 0, %s163
      %s180 = sphi 0, %s164
      %s186 = sphi 0, %s188
      %s189 = sphi 0, %s186
      %s190 = sphi 0, %s189
      %s206 = sphi 0, %s190
      %s212 = sphi 0, %s214
      %s215 = sphi 0, %s212
      %s216 = sphi 0, %s215
      %s232 = sphi 0, %s216
      %s238 = sphi 0, %s240
      %s241 = sphi 0, %s238
      %s242 = sphi 0, %s241
      %s258 = sphi 0, %s242
      %s264 = sphi 0, %s266
      %s267 = sphi 0, %s264
      %s268 = sphi 0, %s267
      %s284 = sphi 0, %s268
      %s290 = sphi 0, %s292
      %s293 = sphi 0, %s290
      %s294 = sphi 0, %s293
      %s310 = sphi 0, %s294
      %s314 = sphi 0, %s314
      %s316 = sphi 0, %s314
      %s317 = sphi 0, %s316
      %s331 = sphi 0, %s317
      %s339 = sphi 0, %s341
      %s342 = sphi 0, %s339
      %s343 = sphi 0, %s342
      %s359 = sphi 0, %s343
      %s369 = sphi 0, %s371
      %s372 = sphi 0, %s369
      %s373 = sphi 0, %s372
      %s389 = sphi 0, %s373
    $region4: #{tpu_custom_call.1} parent=1 // loop_header_branch
      %28 = sbr.rel (%p26) target = $region8
    $region5: #{tpu_custom_call.1} parent=1 // loop_body
      %s30 = ssub.s32 %s25, 1
      %s31 = ssub.s32 %s25, 2
      %s41 = sadd.s32 1, %s34
      %p42 = scmp.ge.s32.totalorder %s41, 4
      %s43 = scalar_select %p42, 0, %s41
      %s44 = sadd.s32 1, %s33
      %s45 = scalar_select %p42, %s44, %s33
      %p46 = scmp.ge.s32.totalorder %s45, 1
      %s47 = scalar_select %p46, 0, %s45
      %s48 = sadd.s32 1, %s32
      %s49 = scalar_select %p46, %s48, %s32
      %p50 = scmp.ge.s32.totalorder %s49, 2
      %s51 = scalar_select %p50, 0, %s49
      %s52 = ssub.s32 %s32, %s51
      %s53 = ssub.s32 %s33, %s47
      %s54 = sor.u32 %s52, %s53
      %p55 = scmp.eq.s32.totalorder %s54, 0
      %s57 = sadd.s32 %s56, 1
      %s58 = scalar_select %p55, %s56, %s57
      %p61 = pneg %p55
      %p62 = scmp.eq.s32.totalorder %s25, 7
      %p63 = por %p61, %p62
      %p64 = scmp.ne.s32.totalorder %s56, %s59
      %p65 = scmp.eq.s32.totalorder %s25, 0
      %p66 = por %p64, %p65
      %p67 = scmp.ne.s32.totalorder %s56, %s59
      %p68 = scmp.eq.s32.totalorder %s30, 7
      %p69 = por %p67, %p68
      %p70 = scmp.ne.s32.totalorder %s59, %s60
      %p71 = scmp.eq.s32.totalorder %s30, 0
      %p72 = por %p70, %p71
      %p73 = scmp.ne.s32.totalorder %s59, %s60
      %p74 = scmp.eq.s32.totalorder %s31, 7
      %p75 = por %p73, %p74
      %p77 = scmp.ne.s32.totalorder %s60, %s76
      %p78 = scmp.eq.s32.totalorder %s31, 0
      %p79 = por %p77, %p78
      %s80 = ssub.s32 %s32, %s51
      %p81 = scmp.eq.s32.totalorder %s80, 0
      %s83 = sadd.s32 %s82, 1
      %s84 = scalar_select %p81, %s82, %s83
      %p87 = pneg %p81
      %p88 = scmp.eq.s32.totalorder %s25, 7
      %p89 = por %p87, %p88
      %p90 = scmp.ne.s32.totalorder %s82, %s85
      %p91 = scmp.eq.s32.totalorder %s25, 0
      %p92 = por %p90, %p91
      %p93 = scmp.ne.s32.totalorder %s82, %s85
      %p94 = scmp.eq.s32.totalorder %s30, 7
      %p95 = por %p93, %p94
      %p96 = scmp.ne.s32.totalorder %s85, %s86
      %p97 = scmp.eq.s32.totalorder %s30, 0
      %p98 = por %p96, %p97
      %p99 = scmp.ne.s32.totalorder %s85, %s86
      %p100 = scmp.eq.s32.totalorder %s31, 7
      %p101 = por %p99, %p100
      %p103 = scmp.ne.s32.totalorder %s86, %s102
      %p104 = scmp.eq.s32.totalorder %s31, 0
      %p105 = por %p103, %p104
      %s106 = ssub.s32 %s32, %s51
      %p107 = scmp.eq.s32.totalorder %s106, 0
      %s109 = sadd.s32 %s108, 1
      %s110 = scalar_select %p107, %s108, %s109
      %p113 = pneg %p107
      %p114 = scmp.eq.s32.totalorder %s25, 7
      %p115 = por %p113, %p114
      %p116 = scmp.ne.s32.totalorder %s108, %s111
      %p117 = scmp.eq.s32.totalorder %s25, 0
      %p118 = por %p116, %p117
      %p119 = scmp.ne.s32.totalorder %s108, %s111
      %p120 = scmp.eq.s32.totalorder %s30, 7
      %p121 = por %p119, %p120
      %p122 = scmp.ne.s32.totalorder %s111, %s112
      %p123 = scmp.eq.s32.totalorder %s30, 0
      %p124 = por %p122, %p123
      %p125 = scmp.ne.s32.totalorder %s111, %s112
      %p126 = scmp.eq.s32.totalorder %s31, 7
      %p127 = por %p125, %p126
      %p129 = scmp.ne.s32.totalorder %s112, %s128
      %p130 = scmp.eq.s32.totalorder %s31, 0
      %p131 = por %p129, %p130
      %s132 = ssub.s32 %s34, %s43
      %p133 = scmp.eq.s32.totalorder %s132, 0
      %s135 = sadd.s32 %s134, 1
      %s136 = scalar_select %p133, %s134, %s135
      %p139 = pneg %p133
      %p140 = scmp.eq.s32.totalorder %s25, 7
      %p141 = por %p139, %p140
      %p142 = scmp.ne.s32.totalorder %s134, %s137
      %p143 = scmp.eq.s32.totalorder %s25, 0
      %p144 = por %p142, %p143
      %p145 = scmp.ne.s32.totalorder %s134, %s137
      %p146 = scmp.eq.s32.totalorder %s30, 7
      %p147 = por %p145, %p146
      %p148 = scmp.ne.s32.totalorder %s137, %s138
      %p149 = scmp.eq.s32.totalorder %s30, 0
      %p150 = por %p148, %p149
      %p151 = scmp.ne.s32.totalorder %s137, %s138
      %p152 = scmp.eq.s32.totalorder %s31, 7
      %p153 = por %p151, %p152
      %p155 = scmp.ne.s32.totalorder %s138, %s154
      %p156 = scmp.eq.s32.totalorder %s31, 0
      %p157 = por %p155, %p156
      %s158 = ssub.s32 %s34, %s43
      %p159 = scmp.eq.s32.totalorder %s158, 0
      %s161 = sadd.s32 %s160, 1
      %s162 = scalar_select %p159, %s160, %s161
      %p165 = pneg %p159
      %p166 = scmp.eq.s32.totalorder %s25, 7
      %p167 = por %p165, %p166
      %p168 = scmp.ne.s32.totalorder %s160, %s163
      %p169 = scmp.eq.s32.totalorder %s25, 0
      %p170 = por %p168, %p169
      %p171 = scmp.ne.s32.totalorder %s160, %s163
      %p172 = scmp.eq.s32.totalorder %s30, 7
      %p173 = por %p171, %p172
      %p174 = scmp.ne.s32.totalorder %s163, %s164
      %p175 = scmp.eq.s32.totalorder %s30, 0
      %p176 = por %p174, %p175
      %p177 = scmp.ne.s32.totalorder %s163, %s164
      %p178 = scmp.eq.s32.totalorder %s31, 7
      %p179 = por %p177, %p178
      %p181 = scmp.ne.s32.totalorder %s164, %s180
      %p182 = scmp.eq.s32.totalorder %s31, 0
      %p183 = por %p181, %p182
      %s184 = ssub.s32 %s34, %s43
      %p185 = scmp.eq.s32.totalorder %s184, 0
      %s187 = sadd.s32 %s186, 1
      %s188 = scalar_select %p185, %s186, %s187
      %p191 = pneg %p185
      %p192 = scmp.eq.s32.totalorder %s25, 7
      %p193 = por %p191, %p192
      %p194 = scmp.ne.s32.totalorder %s186, %s189
      %p195 = scmp.eq.s32.totalorder %s25, 0
      %p196 = por %p194, %p195
      %p197 = scmp.ne.s32.totalorder %s186, %s189
      %p198 = scmp.eq.s32.totalorder %s30, 7
      %p199 = por %p197, %p198
      %p200 = scmp.ne.s32.totalorder %s189, %s190
      %p201 = scmp.eq.s32.totalorder %s30, 0
      %p202 = por %p200, %p201
      %p203 = scmp.ne.s32.totalorder %s189, %s190
      %p204 = scmp.eq.s32.totalorder %s31, 7
      %p205 = por %p203, %p204
      %p207 = scmp.ne.s32.totalorder %s190, %s206
      %p208 = scmp.eq.s32.totalorder %s31, 0
      %p209 = por %p207, %p208
      %s210 = ssub.s32 %s34, %s43
      %p211 = scmp.eq.s32.totalorder %s210, 0
      %s213 = sadd.s32 %s212, 1
      %s214 = scalar_select %p211, %s212, %s213
      %p217 = pneg %p211
      %p218 = scmp.eq.s32.totalorder %s25, 7
      %p219 = por %p217, %p218
      %p220 = scmp.ne.s32.totalorder %s212, %s215
      %p221 = scmp.eq.s32.totalorder %s25, 0
      %p222 = por %p220, %p221
      %p223 = scmp.ne.s32.totalorder %s212, %s215
      %p224 = scmp.eq.s32.totalorder %s30, 7
      %p225 = por %p223, %p224
      %p226 = scmp.ne.s32.totalorder %s215, %s216
      %p227 = scmp.eq.s32.totalorder %s30, 0
      %p228 = por %p226, %p227
      %p229 = scmp.ne.s32.totalorder %s215, %s216
      %p230 = scmp.eq.s32.totalorder %s31, 7
      %p231 = por %p229, %p230
      %p233 = scmp.ne.s32.totalorder %s216, %s232
      %p234 = scmp.eq.s32.totalorder %s31, 0
      %p235 = por %p233, %p234
      %s236 = ssub.s32 %s34, %s43
      %p237 = scmp.eq.s32.totalorder %s236, 0
      %s239 = sadd.s32 %s238, 1
      %s240 = scalar_select %p237, %s238, %s239
      %p243 = pneg %p237
      %p244 = scmp.eq.s32.totalorder %s25, 7
      %p245 = por %p243, %p244
      %p246 = scmp.ne.s32.totalorder %s238, %s241
      %p247 = scmp.eq.s32.totalorder %s25, 0
      %p248 = por %p246, %p247
      %p249 = scmp.ne.s32.totalorder %s238, %s241
      %p250 = scmp.eq.s32.totalorder %s30, 7
      %p251 = por %p249, %p250
      %p252 = scmp.ne.s32.totalorder %s241, %s242
      %p253 = scmp.eq.s32.totalorder %s30, 0
      %p254 = por %p252, %p253
      %p255 = scmp.ne.s32.totalorder %s241, %s242
      %p256 = scmp.eq.s32.totalorder %s31, 7
      %p257 = por %p255, %p256
      %p259 = scmp.ne.s32.totalorder %s242, %s258
      %p260 = scmp.eq.s32.totalorder %s31, 0
      %p261 = por %p259, %p260
      %s262 = ssub.s32 %s34, %s43
      %p263 = scmp.eq.s32.totalorder %s262, 0
      %s265 = sadd.s32 %s264, 1
      %s266 = scalar_select %p263, %s264, %s265
      %p269 = pneg %p263
      %p270 = scmp.eq.s32.totalorder %s25, 7
      %p271 = por %p269, %p270
      %p272 = scmp.ne.s32.totalorder %s264, %s267
      %p273 = scmp.eq.s32.totalorder %s25, 0
      %p274 = por %p272, %p273
      %p275 = scmp.ne.s32.totalorder %s264, %s267
      %p276 = scmp.eq.s32.totalorder %s30, 7
      %p277 = por %p275, %p276
      %p278 = scmp.ne.s32.totalorder %s267, %s268
      %p279 = scmp.eq.s32.totalorder %s30, 0
      %p280 = por %p278, %p279
      %p281 = scmp.ne.s32.totalorder %s267, %s268
      %p282 = scmp.eq.s32.totalorder %s31, 7
      %p283 = por %p281, %p282
      %p285 = scmp.ne.s32.totalorder %s268, %s284
      %p286 = scmp.eq.s32.totalorder %s31, 0
      %p287 = por %p285, %p286
      %s288 = ssub.s32 %s34, %s43
      %p289 = scmp.eq.s32.totalorder %s288, 0
      %s291 = sadd.s32 %s290, 1
      %s292 = scalar_select %p289, %s290, %s291
      %p295 = pneg %p289
      %p296 = scmp.eq.s32.totalorder %s25, 7
      %p297 = por %p295, %p296
      %p298 = scmp.ne.s32.totalorder %s290, %s293
      %p299 = scmp.eq.s32.totalorder %s25, 0
      %p300 = por %p298, %p299
      %p301 = scmp.ne.s32.totalorder %s290, %s293
      %p302 = scmp.eq.s32.totalorder %s30, 7
      %p303 = por %p301, %p302
      %p304 = scmp.ne.s32.totalorder %s293, %s294
      %p305 = scmp.eq.s32.totalorder %s30, 0
      %p306 = por %p304, %p305
      %p307 = scmp.ne.s32.totalorder %s293, %s294
      %p308 = scmp.eq.s32.totalorder %s31, 7
      %p309 = por %p307, %p308
      %p311 = scmp.ne.s32.totalorder %s294, %s310
      %p312 = scmp.eq.s32.totalorder %s31, 0
      %p313 = por %p311, %p312
      %s315 = sadd.s32 %s314, 1
      %p318 = scmp.eq.s32.totalorder %s25, 7
      %p319 = scmp.ne.s32.totalorder %s314, %s316
      %p320 = scmp.eq.s32.totalorder %s25, 0
      %p321 = por %p319, %p320
      %p322 = scmp.ne.s32.totalorder %s314, %s316
      %p323 = scmp.eq.s32.totalorder %s30, 7
      %p324 = por %p322, %p323
      %p325 = scmp.ne.s32.totalorder %s316, %s317
      %p326 = scmp.eq.s32.totalorder %s30, 0
      %p327 = por %p325, %p326
      %p328 = scmp.ne.s32.totalorder %s316, %s317
      %p329 = scmp.eq.s32.totalorder %s31, 7
      %p330 = por %p328, %p329
      %p332 = scmp.ne.s32.totalorder %s317, %s331
      %p333 = scmp.eq.s32.totalorder %s31, 0
      %p334 = por %p332, %p333
      %s335 = ssub.s32 %s32, %s51
      %s336 = ssub.s32 %s33, %s47
      %s337 = sor.u32 %s335, %s336
      %p338 = scmp.eq.s32.totalorder %s337, 0
      %s340 = sadd.s32 %s339, 1
      %s341 = scalar_select %p338, %s339, %s340
      %p344 = pneg %p338
      %p345 = scmp.eq.s32.totalorder %s25, 7
      %p346 = por %p344, %p345
      %p347 = scmp.ne.s32.totalorder %s339, %s342
      %p348 = scmp.eq.s32.totalorder %s25, 0
      %p349 = por %p347, %p348
      %p350 = scmp.ne.s32.totalorder %s339, %s342
      %p351 = scmp.eq.s32.totalorder %s30, 7
      %p352 = por %p350, %p351
      %p353 = scmp.ne.s32.totalorder %s342, %s343
      %p354 = scmp.eq.s32.totalorder %s30, 0
      %p355 = por %p353, %p354
      %p356 = scmp.ne.s32.totalorder %s342, %s343
      %p357 = scmp.eq.s32.totalorder %s31, 7
      %p358 = por %p356, %p357
      %p360 = scmp.ne.s32.totalorder %s343, %s359
      %p361 = scmp.eq.s32.totalorder %s31, 0
      %p362 = por %p360, %p361
      %s363 = ssub.s32 %s32, %s51
      %s364 = ssub.s32 %s34, %s43
      %s365 = sor.u32 %s363, %s364
      %s366 = ssub.s32 %s33, %s47
      %s367 = sor.u32 %s365, %s366
      %p368 = scmp.eq.s32.totalorder %s367, 0
      %s370 = sadd.s32 %s369, 1
      %s371 = scalar_select %p368, %s369, %s370
      %p374 = pneg %p368
      %p375 = scmp.eq.s32.totalorder %s25, 7
      %p376 = por %p374, %p375
      %p377 = scmp.ne.s32.totalorder %s369, %s372
      %p378 = scmp.eq.s32.totalorder %s25, 0
      %p379 = por %p377, %p378
      %p380 = scmp.ne.s32.totalorder %s369, %s372
      %p381 = scmp.eq.s32.totalorder %s30, 7
      %p382 = por %p380, %p381
      %p383 = scmp.ne.s32.totalorder %s372, %s373
      %p384 = scmp.eq.s32.totalorder %s30, 0
      %p385 = por %p383, %p384
      %p386 = scmp.ne.s32.totalorder %s372, %s373
      %p387 = scmp.eq.s32.totalorder %s31, 7
      %p388 = por %p386, %p387
      %p390 = scmp.ne.s32.totalorder %s373, %s389
      %p391 = scmp.eq.s32.totalorder %s31, 0
      %p392 = por %p390, %p391
      %p393 = scmp.le.s32.totalorder 1, %s25
      %p394 = scmp.lt.s32.totalorder %s25, 9
      %p395 = pnand %p393, %p394
      %p396 = pneg %p395
      // Predicated region
      $region9: #{tpu_custom_call.1} parent=5 // pred_check
        _
      $region10: #{tpu_custom_call.1} parent=5 // pred_check_branch
        %398 = sbr.rel (%p395) target = $region12
      $region11: #{tpu_custom_call.1} parent=5 // pred_region
        %s399 = ssub.s32 %s25, 1
        // Predicated region
        $region13: #{tpu_custom_call.1} parent=11 // pred_check
          %p400 = pneg %p327
        $region14: #{tpu_custom_call.1} parent=11 // pred_check_branch
          %402 = sbr.rel (%p400) target = $region16
        $region15: #{tpu_custom_call.1} parent=11 // pred_region
          _
        $region16: #{tpu_custom_call.1} parent=11 // pred_fallthru
          _
      $region12: #{tpu_custom_call.1} parent=5 // pred_fallthru
        _
      %p403 = scmp.lt.s32.totalorder %s25, 8
      // Predicated region
      $region17: #{tpu_custom_call.1} parent=5 // pred_check
        %p404 = pneg %p403
      $region18: #{tpu_custom_call.1} parent=5 // pred_check_branch
        %406 = sbr.rel (%p404) target = $region20
      $region19: #{tpu_custom_call.1} parent=5 // pred_region
        // Predicated region
        $region21: #{tpu_custom_call.1} parent=19 // pred_check
          %p407 = pneg %p66
        $region22: #{tpu_custom_call.1} parent=19 // pred_check_branch
          %409 = sbr.rel (%p407) target = $region24
        $region23: #{tpu_custom_call.1} parent=19 // pred_region
          %p410 = scmp.lt.s32.totalorder %s32, 1
          %s411 = scalar_select %p410, %s32, 1
          %p412 = scmp.lt.s32.totalorder %s33, 0
          %s413 = scalar_select %p412, %s33, 0
          %s414 = sadd.s32 %s413, %s411
          %s415 = smul.addr %s414, 8
          %s416 = scalar_lea.vmem %s0, %s415
        $region24: #{tpu_custom_call.1} parent=19 // pred_fallthru
          _
        // Predicated region
        $region25: #{tpu_custom_call.1} parent=19 // pred_check
          %p417 = pneg %p92
        $region26: #{tpu_custom_call.1} parent=19 // pred_check_branch
          %419 = sbr.rel (%p417) target = $region28
        $region27: #{tpu_custom_call.1} parent=19 // pred_region
          %p420 = scmp.lt.s32.totalorder %s32, 1
          %s421 = scalar_select %p420, %s32, 1
          %s422 = smul.addr %s421, 8
          %s423 = scalar_lea.vmem %s1, %s422
        $region28: #{tpu_custom_call.1} parent=19 // pred_fallthru
          _
        // Predicated region
        $region29: #{tpu_custom_call.1} parent=19 // pred_check
          %p424 = pneg %p118
        $region30: #{tpu_custom_call.1} parent=19 // pred_check_branch
          %426 = sbr.rel (%p424) target = $region32
        $region31: #{tpu_custom_call.1} parent=19 // pred_region
          %p427 = scmp.lt.s32.totalorder %s32, 1
          %s428 = scalar_select %p427, %s32, 1
          %s429 = smul.addr %s428, 8
          %s430 = scalar_lea.vmem %s2, %s429
        $region32: #{tpu_custom_call.1} parent=19 // pred_fallthru
          _
        // Predicated region
        $region33: #{tpu_custom_call.1} parent=19 // pred_check
          %p431 = pneg %p144
        $region34: #{tpu_custom_call.1} parent=19 // pred_check_branch
          %433 = sbr.rel (%p431) target = $region36
        $region35: #{tpu_custom_call.1} parent=19 // pred_region
          %p434 = scmp.lt.s32.totalorder %s34, 3
          %s435 = scalar_select %p434, %s34, 3
          %s436 = smul.addr %s435, 4
          %s437 = smul.addr %s436, 8
          %s438 = scalar_lea.vmem %s3, %s437
        $region36: #{tpu_custom_call.1} parent=19 // pred_fallthru
          _
        // Predicated region
        $region37: #{tpu_custom_call.1} parent=19 // pred_check
          %p439 = pneg %p170
        $region38: #{tpu_custom_call.1} parent=19 // pred_check_branch
          %441 = sbr.rel (%p439) target = $region40
        $region39: #{tpu_custom_call.1} parent=19 // pred_region
          %p442 = scmp.lt.s32.totalorder %s34, 3
          %s443 = scalar_select %p442, %s34, 3
          %s444 = scalar_lea.vmem %s4, %s443
        $region40: #{tpu_custom_call.1} parent=19 // pred_fallthru
          _
        // Predicated region
        $region41: #{tpu_custom_call.1} parent=19 // pred_check
          %p445 = pneg %p196
        $region42: #{tpu_custom_call.1} parent=19 // pred_check_branch
          %447 = sbr.rel (%p445) target = $region44
        $region43: #{tpu_custom_call.1} parent=19 // pred_region
          %p448 = scmp.lt.s32.totalorder %s34, 3
          %s449 = scalar_select %p448, %s34, 3
          %s450 = smul.addr %s449, 4
          %s451 = smul.addr %s450, 8
          %s452 = scalar_lea.vmem %s5, %s451
        $region44: #{tpu_custom_call.1} parent=19 // pred_fallthru
          _
        // Predicated region
        $region45: #{tpu_custom_call.1} parent=19 // pred_check
          %p453 = pneg %p222
        $region46: #{tpu_custom_call.1} parent=19 // pred_check_branch
          %455 = sbr.rel (%p453) target = $region48
        $region47: #{tpu_custom_call.1} parent=19 // pred_region
          %p456 = scmp.lt.s32.totalorder %s34, 3
          %s457 = scalar_select %p456, %s34, 3
          %s458 = scalar_lea.vmem %s6, %s457
        $region48: #{tpu_custom_call.1} parent=19 // pred_fallthru
          _
        // Predicated region
        $region49: #{tpu_custom_call.1} parent=19 // pred_check
          %p459 = pneg %p248
        $region50: #{tpu_custom_call.1} parent=19 // pred_check_branch
          %461 = sbr.rel (%p459) target = $region52
        $region51: #{tpu_custom_call.1} parent=19 // pred_region
          %p462 = scmp.lt.s32.totalorder %s34, 3
          %s463 = scalar_select %p462, %s34, 3
          %s464 = smul.addr %s463, 4
          %s465 = smul.addr %s464, 8
          %s466 = scalar_lea.vmem %s7, %s465
        $region52: #{tpu_custom_call.1} parent=19 // pred_fallthru
          _
        // Predicated region
        $region53: #{tpu_custom_call.1} parent=19 // pred_check
          %p467 = pneg %p274
        $region54: #{tpu_custom_call.1} parent=19 // pred_check_branch
          %469 = sbr.rel (%p467) target = $region56
        $region55: #{tpu_custom_call.1} parent=19 // pred_region
          %p470 = scmp.lt.s32.totalorder %s34, 3
          %s471 = scalar_select %p470, %s34, 3
          %s472 = scalar_lea.vmem %s8, %s471
        $region56: #{tpu_custom_call.1} parent=19 // pred_fallthru
          _
        // Predicated region
        $region57: #{tpu_custom_call.1} parent=19 // pred_check
          %p473 = pneg %p300
        $region58: #{tpu_custom_call.1} parent=19 // pred_check_branch
          %475 = sbr.rel (%p473) target = $region60
        $region59: #{tpu_custom_call.1} parent=19 // pred_region
          %p476 = scmp.lt.s32.totalorder %s34, 3
          %s477 = scalar_select %p476, %s34, 3
          %s478 = smul.addr %s477, 16
          %s479 = smul.addr %s478, 8
          %s480 = scalar_lea.vmem %s9, %s479
        $region60: #{tpu_custom_call.1} parent=19 // pred_fallthru
          _
      $region20: #{tpu_custom_call.1} parent=5 // pred_fallthru
        _
      %p481 = scmp.le.s32.totalorder 1, %s25
      %p482 = scmp.lt.s32.totalorder %s25, 9
      %p483 = pnand %p481, %p482
      %p484 = pneg %p483
      // Predicated region
      $region61: #{tpu_custom_call.1} parent=5 // pred_check
        _
      $region62: #{tpu_custom_call.1} parent=5 // pred_check_branch
        %486 = sbr.rel (%p483) target = $region64
      $region63: #{tpu_custom_call.1} parent=5 // pred_region
        %s487 = ssub.s32 %s25, 1
        %p488 = scmp.lt.s32.totalorder %s35, 1
        %s489 = scalar_select %p488, %s35, 1
        %p490 = scmp.lt.s32.totalorder %s36, 0
        %s491 = scalar_select %p490, %s36, 0
        %s492 = sadd.s32 %s491, %s489
        %s493 = smul.addr %s492, 8
        %s494 = scalar_lea.vmem %s0, %s493
        %p495 = pneg %p72
        %p496 = pneg %p69
        %p497 = scmp.lt.s32.totalorder %s35, 1
        %s498 = scalar_select %p497, %s35, 1
        %s499 = smul.addr %s498, 8
        %s500 = scalar_lea.vmem %s1, %s499
        %p501 = pneg %p98
        %p502 = pneg %p95
        %p503 = scmp.lt.s32.totalorder %s35, 1
        %s504 = scalar_select %p503, %s35, 1
        %s505 = smul.addr %s504, 8
        %s506 = scalar_lea.vmem %s2, %s505
        %p507 = pneg %p124
        %p508 = pneg %p121
        %p509 = scmp.lt.s32.totalorder %s37, 3
        %s510 = scalar_select %p509, %s37, 3
        %s511 = smul.addr %s510, 4
        %s512 = smul.addr %s511, 8
        %s513 = scalar_lea.vmem %s3, %s512
        %p514 = pneg %p150
        %p515 = pneg %p147
        %p516 = scmp.lt.s32.totalorder %s37, 3
        %s517 = scalar_select %p516, %s37, 3
        %s518 = scalar_lea.vmem %s4, %s517
        %p519 = pneg %p176
        %p520 = pneg %p173
        %p521 = scmp.lt.s32.totalorder %s37, 3
        %s522 = scalar_select %p521, %s37, 3
        %s523 = smul.addr %s522, 4
        %s524 = smul.addr %s523, 8
        %s525 = scalar_lea.vmem %s5, %s524
        %p526 = pneg %p202
        %p527 = pneg %p199
        %p528 = scmp.lt.s32.totalorder %s37, 3
        %s529 = scalar_select %p528, %s37, 3
        %s530 = scalar_lea.vmem %s6, %s529
        %p531 = pneg %p228
        %p532 = pneg %p225
        %p533 = scmp.lt.s32.totalorder %s37, 3
        %s534 = scalar_select %p533, %s37, 3
        %s535 = smul.addr %s534, 4
        %s536 = smul.addr %s535, 8
        %s537 = scalar_lea.vmem %s7, %s536
        %p538 = pneg %p254
        %p539 = pneg %p251
        %p540 = scmp.lt.s32.totalorder %s37, 3
        %s541 = scalar_select %p540, %s37, 3
        %s542 = scalar_lea.vmem %s8, %s541
        %p543 = pneg %p280
        %p544 = pneg %p277
        %p545 = scmp.lt.s32.totalorder %s37, 3
        %s546 = scalar_select %p545, %s37, 3
        %s547 = smul.addr %s546, 16
        %s548 = smul.addr %s547, 8
        %s549 = scalar_lea.vmem %s9, %s548
        %p550 = pneg %p306
        %p551 = pneg %p303
        %p552 = pneg %p327
        %p553 = pneg %p324
        %p554 = pneg %p355
        %p555 = pneg %p352
        %s556 = sand.u32 %s342, 1
        %s557 = scalar_lea.sflag [#allocation4], %s556
        %s558 = sand.u32 %s342, 1
        %s559 = smul.addr %s558, 8
        %s560 = scalar_lea.vmem [#allocation3], %s559
        %p561 = pneg %p385
        %p562 = pneg %p382
        %s563 = sand.u32 %s372, 1
        %s564 = scalar_lea.sflag [#allocation6], %s563
        %s565 = sand.u32 %s372, 1
        %s566 = smul.addr %s565, 8
        %s567 = scalar_lea.vmem [#allocation5], %s566
        %p568 = scmp.lt.s32.totalorder %s35, 1
        %s569 = scalar_select %p568, %s35, 1
        %p570 = scmp.lt.s32.totalorder %s36, 0
        %s571 = scalar_select %p570, %s36, 0
        %s572 = sadd.s32 %s571, %s569
        %s573 = smul.addr %s572, 8
        %s574 = scalar_lea.vmem %s0, %s573
        %p575 = scmp.lt.s32.totalorder %s35, 1
        %s576 = scalar_select %p575, %s35, 1
        %s577 = smul.addr %s576, 8
        %s578 = scalar_lea.vmem %s1, %s577
        %p579 = scmp.lt.s32.totalorder %s35, 1
        %s580 = scalar_select %p579, %s35, 1
        %s581 = smul.addr %s580, 8
        %s582 = scalar_lea.vmem %s2, %s581
        %p583 = scmp.lt.s32.totalorder %s37, 3
        %s584 = scalar_select %p583, %s37, 3
        %s585 = smul.addr %s584, 4
        %s586 = smul.addr %s585, 8
        %s587 = scalar_lea.vmem %s3, %s586
        %p588 = scmp.lt.s32.totalorder %s37, 3
        %s589 = scalar_select %p588, %s37, 3
        %s590 = scalar_lea.vmem %s4, %s589
        %p591 = scmp.lt.s32.totalorder %s37, 3
        %s592 = scalar_select %p591, %s37, 3
        %s593 = smul.addr %s592, 4
        %s594 = smul.addr %s593, 8
        %s595 = scalar_lea.vmem %s5, %s594
        %p596 = scmp.lt.s32.totalorder %s37, 3
        %s597 = scalar_select %p596, %s37, 3
        %s598 = scalar_lea.vmem %s6, %s597
        %p599 = scmp.lt.s32.totalorder %s37, 3
        %s600 = scalar_select %p599, %s37, 3
        %s601 = smul.addr %s600, 4
        %s602 = smul.addr %s601, 8
        %s603 = scalar_lea.vmem %s7, %s602
        %p604 = scmp.lt.s32.totalorder %s37, 3
        %s605 = scalar_select %p604, %s37, 3
        %s606 = scalar_lea.vmem %s8, %s605
        %p607 = scmp.lt.s32.totalorder %s37, 3
        %s608 = scalar_select %p607, %s37, 3
        %s609 = smul.addr %s608, 16
        %s610 = smul.addr %s609, 8
        %s611 = scalar_lea.vmem %s9, %s610
        %p613 = scmp.eq.s32.totalorder %s37, 0
        // Predicated region
        $region65: #{tpu_custom_call.1} parent=63 // pred_check
          %p614 = pneg %p613
        $region66: #{tpu_custom_call.1} parent=63 // pred_check_branch
          %616 = sbr.rel (%p614) target = $region68
        $region67: #{tpu_custom_call.1} parent=63 // pred_region
          %vm617 = vcmask 261120
          %618 = vst.msk [vmem:[#allocation2] sm:$0xff] %vm617, 0.0
        $region68: #{tpu_custom_call.1} parent=63 // pred_fallthru
          _
        %v619 = vld [vmem:[%s574] sm:$0xff]
        %v620 = vld [vmem:[%s587] sm:$0xff]
        %v621 = vld [vmem:[%s587 + $0x8] sm:$0xff]
        %v622 = vld [vmem:[%s587 + $0x10] sm:$0xff]
        %v623 = vld [vmem:[%s587 + $0x18] sm:$0xff]
        %v624 = vld [vmem:[%s590] sm:$0x1]
        %v626 = vlaneseq
        %v627 = vshrl.u32 %v626, 7
        %v628 = vsub.s32 0, %v627
        %v629 = vrot.slane %v624, %v628
        %vm631 = vcmask 261120
        %v633 = vsel %vm631, %v619, 0
        %635 = vmatprep.subr.mxu0 0.0
        %636 = vmatpush1.msra.mxu0 %v620
        %637 = vmatprep.subr.mxu0 0.0
        %638 = vmatpush1.msra.mxu0 %v621
        %639 = vmatprep.subr.mxu0 0.0
        %640 = vmatpush1.msra.mxu0 %v622
        %641 = vmatprep.subr.mxu0 0.0
        %642 = vmatpush1.msra.mxu0 %v623
        %643 = vmatprep.subr.mxu0 0.0
        %644 = vmatpush1.msra.mxu0 0.0
        %645 = vmatprep.subr.mxu0 0.0
        %646 = vmatpush1.msra.mxu0 0.0
        %647 = vmatprep.subr.mxu0 0.0
        %648 = vmatpush1.msra.mxu0 0.0
        %649 = vmatprep.subr.mxu0 0.0
        %650 = vmatpush1.msra.mxu0 0.0
        %651 = vmatprep.subr.mxu0 0.0
        %652 = vmatpush1.msra.mxu0 0.0
        %653 = vmatprep.subr.mxu0 0.0
        %654 = vmatpush1.msra.mxu0 0.0
        %655 = vmatprep.subr.mxu0 0.0
        %656 = vmatpush1.msra.mxu0 0.0
        %657 = vmatprep.subr.mxu0 0.0
        %658 = vmatpush1.msra.mxu0 0.0
        %659 = vmatprep.subr.mxu0 0.0
        %660 = vmatpush1.msra.mxu0 0.0
        %661 = vmatprep.subr.mxu0 0.0
        %662 = vmatpush1.msra.mxu0 0.0
        %663 = vmatprep.subr.mxu0 0.0
        %664 = vmatpush1.msra.mxu0 0.0
        %665 = vmatprep.subr.mxu0 0.0
        %666 = vmatpush1.msra.mxu0 0.0
        %667 = vmatprep.subr.mxu0 0.0
        %668 = vmatpush1.msra.mxu0 0.0
        %669 = vmatprep.subr.mxu0 0.0
        %670 = vmatpush1.msra.mxu0 0.0
        %671 = vmatprep.subr.mxu0 0.0
        %672 = vmatpush1.msra.mxu0 0.0
        %673 = vmatprep.subr.mxu0 0.0
        %674 = vmatpush1.msra.mxu0 0.0
        %675 = vmatprep.subr.mxu0 0.0
        %676 = vmatpush1.msra.mxu0 0.0
        %677 = vmatprep.subr.mxu0 0.0
        %678 = vmatpush1.msra.mxu0 0.0
        %679 = vmatprep.subr.mxu0 0.0
        %680 = vmatpush1.msra.mxu0 0.0
        %681 = vmatprep.subr.mxu0 0.0
        %682 = vmatpush1.msra.mxu0 0.0
        %683 = vmatprep.subr.mxu0 0.0
        %684 = vmatpush1.msra.mxu0 0.0
        %685 = vmatprep.subr.mxu0 0.0
        %686 = vmatpush1.msra.mxu0 0.0
        %687 = vmatprep.subr.mxu0 0.0
        %688 = vmatpush1.msra.mxu0 0.0
        %689 = vmatprep.subr.mxu0 0.0
        %690 = vmatpush1.msra.mxu0 0.0
        %691 = vmatprep.subr.mxu0 0.0
        %692 = vmatpush1.msra.mxu0 0.0
        %693 = vmatprep.subr.mxu0 0.0
        %694 = vmatpush1.msra.mxu0 0.0
        %695 = vmatprep.subr.mxu0 0.0
        %696 = vmatpush1.msra.mxu0 0.0
        %697 = vmatprep.subr.mxu0 0.0
        %698 = vmatpush1.msra.mxu0 0.0
        %699 = vmatprep.mubr.f32.mxu0 0.0
        %700 = vmatmul.mubr.f32.gmra.mrb[0].mxu0 %v633
        %v701 = vpop.f32.mrb[0].mxu0
        %v702 = vadd.f32 %v629, %v701
        %v703 = vpop.f32.mrb[0].mxu0
        %704 = vdwg.mxu0
        %v705 = vmul.f32 %v702, 0.25
        %v706 = vld [vmem:[%s578] sm:$0xff]
        %v707 = vld [vmem:[%s595] sm:$0xff]
        %v708 = vld [vmem:[%s595 + $0x8] sm:$0xff]
        %v709 = vld [vmem:[%s595 + $0x10] sm:$0xff]
        %v710 = vld [vmem:[%s595 + $0x18] sm:$0xff]
        %v711 = vld [vmem:[%s598] sm:$0x1]
        %v713 = vlaneseq
        %v714 = vshrl.u32 %v713, 7
        %v715 = vsub.s32 0, %v714
        %v716 = vrot.slane %v711, %v715
        %v719 = vsel %vm631, %v706, 0
        %721 = vmatprep.subr.mxu0 0.0
        %722 = vmatpush1.msra.mxu0 %v707
        %723 = vmatprep.subr.mxu0 0.0
        %724 = vmatpush1.msra.mxu0 %v708
        %725 = vmatprep.subr.mxu0 0.0
        %726 = vmatpush1.msra.mxu0 %v709
        %727 = vmatprep.subr.mxu0 0.0
        %728 = vmatpush1.msra.mxu0 %v710
        %729 = vmatprep.subr.mxu0 0.0
        %730 = vmatpush1.msra.mxu0 0.0
        %731 = vmatprep.subr.mxu0 0.0
        %732 = vmatpush1.msra.mxu0 0.0
        %733 = vmatprep.subr.mxu0 0.0
        %734 = vmatpush1.msra.mxu0 0.0
        %735 = vmatprep.subr.mxu0 0.0
        %736 = vmatpush1.msra.mxu0 0.0
        %737 = vmatprep.subr.mxu0 0.0
        %738 = vmatpush1.msra.mxu0 0.0
        %739 = vmatprep.subr.mxu0 0.0
        %740 = vmatpush1.msra.mxu0 0.0
        %741 = vmatprep.subr.mxu0 0.0
        %742 = vmatpush1.msra.mxu0 0.0
        %743 = vmatprep.subr.mxu0 0.0
        %744 = vmatpush1.msra.mxu0 0.0
        %745 = vmatprep.subr.mxu0 0.0
        %746 = vmatpush1.msra.mxu0 0.0
        %747 = vmatprep.subr.mxu0 0.0
        %748 = vmatpush1.msra.mxu0 0.0
        %749 = vmatprep.subr.mxu0 0.0
        %750 = vmatpush1.msra.mxu0 0.0
        %751 = vmatprep.subr.mxu0 0.0
        %752 = vmatpush1.msra.mxu0 0.0
        %753 = vmatprep.subr.mxu0 0.0
        %754 = vmatpush1.msra.mxu0 0.0
        %755 = vmatprep.subr.mxu0 0.0
        %756 = vmatpush1.msra.mxu0 0.0
        %757 = vmatprep.subr.mxu0 0.0
        %758 = vmatpush1.msra.mxu0 0.0
        %759 = vmatprep.subr.mxu0 0.0
        %760 = vmatpush1.msra.mxu0 0.0
        %761 = vmatprep.subr.mxu0 0.0
        %762 = vmatpush1.msra.mxu0 0.0
        %763 = vmatprep.subr.mxu0 0.0
        %764 = vmatpush1.msra.mxu0 0.0
        %765 = vmatprep.subr.mxu0 0.0
        %766 = vmatpush1.msra.mxu0 0.0
        %767 = vmatprep.subr.mxu0 0.0
        %768 = vmatpush1.msra.mxu0 0.0
        %769 = vmatprep.subr.mxu0 0.0
        %770 = vmatpush1.msra.mxu0 0.0
        %771 = vmatprep.subr.mxu0 0.0
        %772 = vmatpush1.msra.mxu0 0.0
        %773 = vmatprep.subr.mxu0 0.0
        %774 = vmatpush1.msra.mxu0 0.0
        %775 = vmatprep.subr.mxu0 0.0
        %776 = vmatpush1.msra.mxu0 0.0
        %777 = vmatprep.subr.mxu0 0.0
        %778 = vmatpush1.msra.mxu0 0.0
        %779 = vmatprep.subr.mxu0 0.0
        %780 = vmatpush1.msra.mxu0 0.0
        %781 = vmatprep.subr.mxu0 0.0
        %782 = vmatpush1.msra.mxu0 0.0
        %783 = vmatprep.subr.mxu0 0.0
        %784 = vmatpush1.msra.mxu0 0.0
        %785 = vmatprep.mubr.f32.mxu0 0.0
        %786 = vmatmul.mubr.f32.gmra.mrb[0].mxu0 %v719
        %v787 = vpop.f32.mrb[0].mxu0
        %v788 = vadd.f32 %v716, %v787
        %v789 = vpop.f32.mrb[0].mxu0
        %790 = vdwg.mxu0
        %v791 = vld [vmem:[%s582] sm:$0xff]
        %v792 = vld [vmem:[%s603] sm:$0xff]
        %v793 = vld [vmem:[%s603 + $0x8] sm:$0xff]
        %v794 = vld [vmem:[%s603 + $0x10] sm:$0xff]
        %v795 = vld [vmem:[%s603 + $0x18] sm:$0xff]
        %v796 = vld [vmem:[%s606] sm:$0x1]
        %v798 = vlaneseq
        %v799 = vshrl.u32 %v798, 7
        %v800 = vsub.s32 0, %v799
        %v801 = vrot.slane %v796, %v800
        %v804 = vsel %vm631, %v791, 0
        %806 = vmatprep.subr.mxu0 0.0
        %807 = vmatpush1.msra.mxu0 %v792
        %808 = vmatprep.subr.mxu0 0.0
        %809 = vmatpush1.msra.mxu0 %v793
        %810 = vmatprep.subr.mxu0 0.0
        %811 = vmatpush1.msra.mxu0 %v794
        %812 = vmatprep.subr.mxu0 0.0
        %813 = vmatpush1.msra.mxu0 %v795
        %814 = vmatprep.subr.mxu0 0.0
        %815 = vmatpush1.msra.mxu0 0.0
        %816 = vmatprep.subr.mxu0 0.0
        %817 = vmatpush1.msra.mxu0 0.0
        %818 = vmatprep.subr.mxu0 0.0
        %819 = vmatpush1.msra.mxu0 0.0
        %820 = vmatprep.subr.mxu0 0.0
        %821 = vmatpush1.msra.mxu0 0.0
        %822 = vmatprep.subr.mxu0 0.0
        %823 = vmatpush1.msra.mxu0 0.0
        %824 = vmatprep.subr.mxu0 0.0
        %825 = vmatpush1.msra.mxu0 0.0
        %826 = vmatprep.subr.mxu0 0.0
        %827 = vmatpush1.msra.mxu0 0.0
        %828 = vmatprep.subr.mxu0 0.0
        %829 = vmatpush1.msra.mxu0 0.0
        %830 = vmatprep.subr.mxu0 0.0
        %831 = vmatpush1.msra.mxu0 0.0
        %832 = vmatprep.subr.mxu0 0.0
        %833 = vmatpush1.msra.mxu0 0.0
        %834 = vmatprep.subr.mxu0 0.0
        %835 = vmatpush1.msra.mxu0 0.0
        %836 = vmatprep.subr.mxu0 0.0
        %837 = vmatpush1.msra.mxu0 0.0
        %838 = vmatprep.subr.mxu0 0.0
        %839 = vmatpush1.msra.mxu0 0.0
        %840 = vmatprep.subr.mxu0 0.0
        %841 = vmatpush1.msra.mxu0 0.0
        %842 = vmatprep.subr.mxu0 0.0
        %843 = vmatpush1.msra.mxu0 0.0
        %844 = vmatprep.subr.mxu0 0.0
        %845 = vmatpush1.msra.mxu0 0.0
        %846 = vmatprep.subr.mxu0 0.0
        %847 = vmatpush1.msra.mxu0 0.0
        %848 = vmatprep.subr.mxu0 0.0
        %849 = vmatpush1.msra.mxu0 0.0
        %850 = vmatprep.subr.mxu0 0.0
        %851 = vmatpush1.msra.mxu0 0.0
        %852 = vmatprep.subr.mxu0 0.0
        %853 = vmatpush1.msra.mxu0 0.0
        %854 = vmatprep.subr.mxu0 0.0
        %855 = vmatpush1.msra.mxu0 0.0
        %856 = vmatprep.subr.mxu0 0.0
        %857 = vmatpush1.msra.mxu0 0.0
        %858 = vmatprep.subr.mxu0 0.0
        %859 = vmatpush1.msra.mxu0 0.0
        %860 = vmatprep.subr.mxu0 0.0
        %861 = vmatpush1.msra.mxu0 0.0
        %862 = vmatprep.subr.mxu0 0.0
        %863 = vmatpush1.msra.mxu0 0.0
        %864 = vmatprep.subr.mxu0 0.0
        %865 = vmatpush1.msra.mxu0 0.0
        %866 = vmatprep.subr.mxu0 0.0
        %867 = vmatpush1.msra.mxu0 0.0
        %868 = vmatprep.subr.mxu0 0.0
        %869 = vmatpush1.msra.mxu0 0.0
        %870 = vmatprep.mubr.f32.mxu0 0.0
        %871 = vmatmul.mubr.f32.gmra.mrb[0].mxu0 %v804
        %v872 = vpop.f32.mrb[0].mxu0
        %v873 = vadd.f32 %v801, %v872
        %v874 = vpop.f32.mrb[0].mxu0
        %875 = vdwg.mxu0
        %876 = vmatprep.subr.mxu0 0.0
        %877 = vmatpush1.xpose.msra.mxu0 %v788
        %878 = vmatprep.subr.mxu0 0.0
        %879 = vmatpush1.xpose.msra.mxu0 0.0
        %880 = vmatprep.subr.mxu0 0.0
        %881 = vmatpush1.xpose.msra.mxu0 0.0
        %882 = vmatprep.subr.mxu0 0.0
        %883 = vmatpush1.xpose.msra.mxu0 0.0
        %884 = vmatprep.subr.mxu0 0.0
        %885 = vmatpush1.xpose.msra.mxu0 0.0
        %886 = vmatprep.subr.mxu0 0.0
        %887 = vmatpush1.xpose.msra.mxu0 0.0
        %888 = vmatprep.subr.mxu0 0.0
        %889 = vmatpush1.xpose.msra.mxu0 0.0
        %890 = vmatprep.subr.mxu0 0.0
        %891 = vmatpush1.xpose.msra.mxu0 0.0
        %892 = vmatprep.subr.mxu0 0.0
        %893 = vmatpush1.xpose.msra.mxu0 0.0
        %894 = vmatprep.subr.mxu0 0.0
        %895 = vmatpush1.xpose.msra.mxu0 0.0
        %896 = vmatprep.subr.mxu0 0.0
        %897 = vmatpush1.xpose.msra.mxu0 0.0
        %898 = vmatprep.subr.mxu0 0.0
        %899 = vmatpush1.xpose.msra.mxu0 0.0
        %900 = vmatprep.subr.mxu0 0.0
        %901 = vmatpush1.xpose.msra.mxu0 0.0
        %902 = vmatprep.subr.mxu0 0.0
        %903 = vmatpush1.xpose.msra.mxu0 0.0
        %904 = vmatprep.subr.mxu0 0.0
        %905 = vmatpush1.xpose.msra.mxu0 0.0
        %906 = vmatprep.subr.mxu0 0.0
        %907 = vmatpush1.xpose.msra.mxu0 0.0
        %908 = vmatprep.subr.mxu0 0.0
        %909 = vmatpush1.xpose.msra.mxu0 0.0
        %910 = vmatprep.subr.mxu0 0.0
        %911 = vmatpush1.xpose.msra.mxu0 0.0
        %912 = vmatprep.subr.mxu0 0.0
        %913 = vmatpush1.xpose.msra.mxu0 0.0
        %914 = vmatprep.subr.mxu0 0.0
        %915 = vmatpush1.xpose.msra.mxu0 0.0
        %916 = vmatprep.subr.mxu0 0.0
        %917 = vmatpush1.xpose.msra.mxu0 0.0
        %918 = vmatprep.subr.mxu0 0.0
        %919 = vmatpush1.xpose.msra.mxu0 0.0
        %920 = vmatprep.subr.mxu0 0.0
        %921 = vmatpush1.xpose.msra.mxu0 0.0
        %922 = vmatprep.subr.mxu0 0.0
        %923 = vmatpush1.xpose.msra.mxu0 0.0
        %924 = vmatprep.subr.mxu0 0.0
        %925 = vmatpush1.xpose.msra.mxu0 0.0
        %926 = vmatprep.subr.mxu0 0.0
        %927 = vmatpush1.xpose.msra.mxu0 0.0
        %928 = vmatprep.subr.mxu0 0.0
        %929 = vmatpush1.xpose.msra.mxu0 0.0
        %930 = vmatprep.subr.mxu0 0.0
        %931 = vmatpush1.xpose.msra.mxu0 0.0
        %932 = vmatprep.subr.mxu0 0.0
        %933 = vmatpush1.xpose.msra.mxu0 0.0
        %934 = vmatprep.subr.mxu0 0.0
        %935 = vmatpush1.xpose.msra.mxu0 0.0
        %936 = vmatprep.subr.mxu0 0.0
        %937 = vmatpush1.xpose.msra.mxu0 0.0
        %938 = vmatprep.subr.mxu0 0.0
        %939 = vmatpush1.xpose.msra.mxu0 0.0
        %940 = vmatprep.mubr.f32.mxu0 0.0
        %941 = vmatmul.mubr.f32.gmra.mrb[0].mxu0 %v705
        %v942 = vpop.f32.mrb[0].mxu0
        %v943 = vadd.f32 0.0, %v942
        %v944 = vpop.f32.mrb[0].mxu0
        %945 = vdwg.mxu0
        %vm946 = vcmask 64512
        %v947 = vsel %vm946, %v943, -inf
        %948 = vmax.xlane.f32.xlu0 %v947
        %v949 = vpop.xlane.xlu0 %948
        %v950 = vsub.f32 %v943, %v949
        %v951 = vmul.f32 %v950, 1.442695
        %v952 = vpow.pop %v951
        %v953 = vsel %vm946, %v952, 0.0
        %954 = vadd.xlane.f32.xlu0 %v953
        %v955 = vpop.xlane.xlu0 %954
        %v956 = vrcp.pop %v955
        %v957 = vmul.f32 1.0, %v956
        %v958 = vmul.f32 %v952, %v957
        %959 = vst.msk [vmem:[%s567] sm:$0xff] %vm946, %v958
        %v960 = vrcp.pop %v955
        %v961 = vpack.c.bf16 %v952, %v952
        %v962 = vpack.c.bf16 %v873, %v873
        %v964 = vsel %vm946, %v961, 0
        %vm966 = vcmask 1043456
        %v968 = vsel %vm966, %v962, 0
        %970 = vmatprep.subr.bf16.mxu0 0
        %971 = vmatpush1.bf16.msra.mxu0 %v968
        %972 = vmatprep.subr.bf16.mxu0 0
        %973 = vmatpush1.bf16.msra.mxu0 0
        %974 = vmatprep.subr.bf16.mxu0 0
        %975 = vmatpush1.bf16.msra.mxu0 0
        %976 = vmatprep.subr.bf16.mxu0 0
        %977 = vmatpush1.bf16.msra.mxu0 0
        %978 = vmatprep.subr.bf16.mxu0 0
        %979 = vmatpush1.bf16.msra.mxu0 0
        %980 = vmatprep.subr.bf16.mxu0 0
        %981 = vmatpush1.bf16.msra.mxu0 0
        %982 = vmatprep.subr.bf16.mxu0 0
        %983 = vmatpush1.bf16.msra.mxu0 0
        %984 = vmatprep.subr.bf16.mxu0 0
        %985 = vmatpush1.bf16.msra.mxu0 0
        %986 = vmatprep.subr.bf16.mxu0 0
        %987 = vmatpush1.bf16.msra.mxu0 0
        %988 = vmatprep.subr.bf16.mxu0 0
        %989 = vmatpush1.bf16.msra.mxu0 0
        %990 = vmatprep.subr.bf16.mxu0 0
        %991 = vmatpush1.bf16.msra.mxu0 0
        %992 = vmatprep.subr.bf16.mxu0 0
        %993 = vmatpush1.bf16.msra.mxu0 0
        %994 = vmatprep.subr.bf16.mxu0 0
        %995 = vmatpush1.bf16.msra.mxu0 0
        %996 = vmatprep.subr.bf16.mxu0 0
        %997 = vmatpush1.bf16.msra.mxu0 0
        %998 = vmatprep.subr.bf16.mxu0 0
        %999 = vmatpush1.bf16.msra.mxu0 0
        %1000 = vmatprep.subr.bf16.mxu0 0
        %1001 = vmatpush1.bf16.msra.mxu0 0
        %1002 = vmatprep.mubr.bf16.mxu0 0
        %1003 = vmatmul.mubr.bf16.gmra.mrb[0].mxu0 %v964
        %v1004 = vpop.f32.mrb[0].mxu0
        %v1005 = vadd.f32 0.0, %v1004
        %v1006 = vpop.f32.mrb[0].mxu0
        %v1007 = vpop.f32.mrb[0].mxu0
        %v1008 = vpop.f32.mrb[0].mxu0
        %1009 = vdwg.mxu0
        %v1010 = vmul.f32 %v1005, %v960
        %v1011 = vld [vmem:[#allocation2] sm:$0xff]
        %v1012 = vld [vmem:[%s611] sm:$0xff]
        %v1013 = vld [vmem:[%s611 + $0x8] sm:$0xff]
        %v1014 = vld [vmem:[%s611 + $0x10] sm:$0xff]
        %v1015 = vld [vmem:[%s611 + $0x18] sm:$0xff]
        %v1016 = vld [vmem:[%s611 + $0x20] sm:$0xff]
        %v1017 = vld [vmem:[%s611 + $0x28] sm:$0xff]
        %v1018 = vld [vmem:[%s611 + $0x30] sm:$0xff]
        %v1019 = vld [vmem:[%s611 + $0x38] sm:$0xff]
        %v1020 = vld [vmem:[%s611 + $0x40] sm:$0xff]
        %v1021 = vld [vmem:[%s611 + $0x48] sm:$0xff]
        %v1022 = vld [vmem:[%s611 + $0x50] sm:$0xff]
        %v1023 = vld [vmem:[%s611 + $0x58] sm:$0xff]
        %v1024 = vld [vmem:[%s611 + $0x60] sm:$0xff]
        %v1025 = vld [vmem:[%s611 + $0x68] sm:$0xff]
        %v1026 = vld [vmem:[%s611 + $0x70] sm:$0xff]
        %v1027 = vld [vmem:[%s611 + $0x78] sm:$0xff]
        %1028 = vmatprep.subr.mxu0 0.0
        %1029 = vmatpush1.msra.mxu0 %v1012
        %1030 = vmatprep.subr.mxu0 0.0
        %1031 = vmatpush1.msra.mxu0 %v1013
        %1032 = vmatprep.subr.mxu0 0.0
        %1033 = vmatpush1.msra.mxu0 %v1014
        %1034 = vmatprep.subr.mxu0 0.0
        %1035 = vmatpush1.msra.mxu0 %v1015
        %1036 = vmatprep.subr.mxu0 0.0
        %1037 = vmatpush1.msra.mxu0 %v1016
        %1038 = vmatprep.subr.mxu0 0.0
        %1039 = vmatpush1.msra.mxu0 %v1017
        %1040 = vmatprep.subr.mxu0 0.0
        %1041 = vmatpush1.msra.mxu0 %v1018
        %1042 = vmatprep.subr.mxu0 0.0
        %1043 = vmatpush1.msra.mxu0 %v1019
        %1044 = vmatprep.subr.mxu0 0.0
        %1045 = vmatpush1.msra.mxu0 %v1020
        %1046 = vmatprep.subr.mxu0 0.0
        %1047 = vmatpush1.msra.mxu0 %v1021
        %1048 = vmatprep.subr.mxu0 0.0
        %1049 = vmatpush1.msra.mxu0 %v1022
        %1050 = vmatprep.subr.mxu0 0.0
        %1051 = vmatpush1.msra.mxu0 %v1023
        %1052 = vmatprep.subr.mxu0 0.0
        %1053 = vmatpush1.msra.mxu0 %v1024
        %1054 = vmatprep.subr.mxu0 0.0
        %1055 = vmatpush1.msra.mxu0 %v1025
        %1056 = vmatprep.subr.mxu0 0.0
        %1057 = vmatpush1.msra.mxu0 %v1026
        %1058 = vmatprep.subr.mxu0 0.0
        %1059 = vmatpush1.msra.mxu0 %v1027
        %1060 = vmatprep.subr.mxu0 0.0
        %1061 = vmatpush1.msra.mxu0 0.0
        %1062 = vmatprep.subr.mxu0 0.0
        %1063 = vmatpush1.msra.mxu0 0.0
        %1064 = vmatprep.subr.mxu0 0.0
        %1065 = vmatpush1.msra.mxu0 0.0
        %1066 = vmatprep.subr.mxu0 0.0
        %1067 = vmatpush1.msra.mxu0 0.0
        %1068 = vmatprep.subr.mxu0 0.0
        %1069 = vmatpush1.msra.mxu0 0.0
        %1070 = vmatprep.subr.mxu0 0.0
        %1071 = vmatpush1.msra.mxu0 0.0
        %1072 = vmatprep.subr.mxu0 0.0
        %1073 = vmatpush1.msra.mxu0 0.0
        %1074 = vmatprep.subr.mxu0 0.0
        %1075 = vmatpush1.msra.mxu0 0.0
        %1076 = vmatprep.subr.mxu0 0.0
        %1077 = vmatpush1.msra.mxu0 0.0
        %1078 = vmatprep.subr.mxu0 0.0
        %1079 = vmatpush1.msra.mxu0 0.0
        %1080 = vmatprep.subr.mxu0 0.0
        %1081 = vmatpush1.msra.mxu0 0.0
        %1082 = vmatprep.subr.mxu0 0.0
        %1083 = vmatpush1.msra.mxu0 0.0
        %1084 = vmatprep.subr.mxu0 0.0
        %1085 = vmatpush1.msra.mxu0 0.0
        %1086 = vmatprep.subr.mxu0 0.0
        %1087 = vmatpush1.msra.mxu0 0.0
        %1088 = vmatprep.subr.mxu0 0.0
        %1089 = vmatpush1.msra.mxu0 0.0
        %1090 = vmatprep.subr.mxu0 0.0
        %1091 = vmatpush1.msra.mxu0 0.0
        %1092 = vmatprep.mubr.f32.mxu0 0.0
        %1093 = vmatmul.mubr.f32.gmra.mrb[0].mxu0 %v1010
        %v1094 = vpop.f32.mrb[0].mxu0
        %v1095 = vadd.f32 0.0, %v1094
        %v1096 = vpop.f32.mrb[0].mxu0
        %1097 = vdwg.mxu0
        %v1098 = vadd.f32 %v1011, %v1095
        %1099 = vst.msk [vmem:[#allocation2] sm:$0xff] %vm631, %v1098
        %p1100 = scmp.eq.s32.totalorder %s37, 3
        // Predicated region
        $region69: #{tpu_custom_call.1} parent=63 // pred_check
          %p1101 = pneg %p1100
        $region70: #{tpu_custom_call.1} parent=63 // pred_check_branch
          %1103 = sbr.rel (%p1101) target = $region72
        $region71: #{tpu_custom_call.1} parent=63 // pred_region
          %v1104 = vld [vmem:[#allocation2] sm:$0xff]
          %v1105 = vld [vmem:[%s10] sm:$0x1]
          %v1107 = vlaneseq
          %v1108 = vshrl.u32 %v1107, 7
          %v1109 = vsub.s32 0, %v1108
          %v1110 = vrot.slane %v1105, %v1109
          %v1112 = vadd.f32 %v1104, %v1110
          %1113 = vst.msk [vmem:[%s560] sm:$0xff] %vm631, %v1112
        $region72: #{tpu_custom_call.1} parent=63 // pred_fallthru
          _
        %s1114 = sand.u32 %s342, 1
        %s1115 = scalar_lea.sflag [#allocation4], %s1114
        %s1116 = sand.u32 %s342, 1
        %s1117 = smul.addr %s1116, 8
        %s1118 = scalar_lea.vmem [#allocation3], %s1117
        %s1119 = sand.u32 %s372, 1
        %s1120 = scalar_lea.sflag [#allocation6], %s1119
        %s1121 = sand.u32 %s372, 1
        %s1122 = smul.addr %s1121, 8
        %s1123 = scalar_lea.vmem [#allocation5], %s1122
        // Predicated region
        $region73: #{tpu_custom_call.1} parent=63 // pred_check
          %p1124 = pneg %p352
        $region74: #{tpu_custom_call.1} parent=63 // pred_check_branch
          %1126 = sbr.rel (%p1124) target = $region76
        $region75: #{tpu_custom_call.1} parent=63 // pred_region
          %s1128 = ssub.s32 128, 128
          %1129 = vsyncadd %s1115, %s1128
          %s1130 = sadd.s32 %s36, %s35
          %s1131 = smul.addr %s1130, 128
          %s1132 = scalar_lea.hbm %s11, %s1131
          %s1134 = sshll.u32 %s1118, 4
          %s1135 = int_to_ptr.vmem [resolvable:$true] %s1134
          %1137 = dma.vmem_to_hbm [thread:$0]  %s1135, 128, %s1132, %s1115
        $region76: #{tpu_custom_call.1} parent=63 // pred_fallthru
          _
        // Predicated region
        $region77: #{tpu_custom_call.1} parent=63 // pred_check
          %p1138 = pneg %p382
        $region78: #{tpu_custom_call.1} parent=63 // pred_check_branch
          %1140 = sbr.rel (%p1138) target = $region80
        $region79: #{tpu_custom_call.1} parent=63 // pred_region
          %s1142 = ssub.s32 128, 128
          %1143 = vsyncadd %s1120, %s1142
          %s1144 = sadd.s32 %s36, %s37
          %s1145 = smul.addr %s35, 4
          %s1146 = sadd.s32 %s1144, %s1145
          %s1147 = smul.addr %s1146, 128
          %s1148 = scalar_lea.hbm %s12, %s1147
          %s1150 = sshll.u32 %s1123, 4
          %s1151 = int_to_ptr.vmem [resolvable:$true] %s1150
          %1153 = dma.vmem_to_hbm [thread:$0]  %s1151, 128, %s1148, %s1120
        $region80: #{tpu_custom_call.1} parent=63 // pred_fallthru
          _
      $region64: #{tpu_custom_call.1} parent=5 // pred_fallthru
        _
      %p1154 = scmp.le.s32.totalorder 2, %s25
      // Predicated region
      $region81: #{tpu_custom_call.1} parent=5 // pred_check
        %p1155 = pneg %p1154
      $region82: #{tpu_custom_call.1} parent=5 // pred_check_branch
        %1157 = sbr.rel (%p1155) target = $region84
      $region83: #{tpu_custom_call.1} parent=5 // pred_region
        %s1158 = ssub.s32 %s25, 2
        // Predicated region
        $region85: #{tpu_custom_call.1} parent=83 // pred_check
          %p1159 = pneg %p358
        $region86: #{tpu_custom_call.1} parent=83 // pred_check_branch
          %1161 = sbr.rel (%p1159) target = $region88
        $region87: #{tpu_custom_call.1} parent=83 // pred_region
          %s1162 = sand.u32 %s343, 1
          %s1163 = scalar_lea.sflag [#allocation4], %s1162
          %s1164 = sand.u32 %s343, 1
          %s1165 = smul.addr %s1164, 8
          %s1166 = scalar_lea.vmem [#allocation3], %s1165
          %1167 = dma.done %s1163, 128
        $region88: #{tpu_custom_call.1} parent=83 // pred_fallthru
          _
        // Predicated region
        $region89: #{tpu_custom_call.1} parent=83 // pred_check
          %p1168 = pneg %p388
        $region90: #{tpu_custom_call.1} parent=83 // pred_check_branch
          %1170 = sbr.rel (%p1168) target = $region92
        $region91: #{tpu_custom_call.1} parent=83 // pred_region
          %s1171 = sand.u32 %s373, 1
          %s1172 = scalar_lea.sflag [#allocation6], %s1171
          %s1173 = sand.u32 %s373, 1
          %s1174 = smul.addr %s1173, 8
          %s1175 = scalar_lea.vmem [#allocation5], %s1174
          %1176 = dma.done %s1172, 128
        $region92: #{tpu_custom_call.1} parent=83 // pred_fallthru
          _
      $region84: #{tpu_custom_call.1} parent=5 // pred_fallthru
        _
    $region6: #{tpu_custom_call.1} parent=1 // loop_footer
      %s29 = sadd.s32 1, %s25
    $region7: #{tpu_custom_call.1} parent=1 // loop_footer_branch
      %24 = sbr.rel target = $region3
    $region8: #{tpu_custom_call.1} parent=1 // loop_exit
      _
    %1177 = vsyncpa [#allocation4], 1
    %s1178 = scalar_lea.sflag [#allocation4], 1
    %1179 = vsyncpa %s1178, 1
    %1180 = vsyncpa [#allocation6], 1
    %s1181 = scalar_lea.sflag [#allocation6], 1
    %1182 = vsyncpa %s1181, 1

</llo_original>
